<compile_context>
chip_gen: v6e
topology: v6e:2x2x1
jax: 0.10.0
libtpu: 0.0.40
codegen_flags: <defaults>
</compile_context>

<pallas_src>
import functools

import jax
import jax.numpy as jnp
import numpy as np
from jax.experimental import pallas as pl
from jax.experimental.pallas import tpu as pltpu

WIDTH = 16        # model.width (left causal pad of the time axis)
K = 5             # Conv1d kernel size for all 4 conv layers
N_CONV = 4        # number of stacked conv layers
SLAB_LANES = 128  # lane width of the packed parameter slab

# Zero-pad batching trick is only valid if the per-batch zero block covers the
# full receptive-field shrinkage of the conv stack.
assert WIDTH >= N_CONV * (K - 1), "pad width must cover the conv receptive field"


def _pack_params(params):
    """Pack every weight/bias into one (rows, 128) f32 slab.

    Each piece is padded to a multiple of 8 rows (sublane aligned) and placed
    in the first `cols` lanes; the kernel recovers it with static slices.
    Returns (slab, {name: row_offset}).
    """
    (w1, b1, w2, b2, cw1, cb1, cw2, cb2, cw3, cb3, cw4, cb4) = params
    pieces = [
        ("w1a", w1[:, :128]), ("w1b", w1[:, 128:]),          # fc1 split in two
        ("b1a", b1[:, :128]), ("b1b", b1[:, 128:]),          # 128-lane halves
        ("w2", w2), ("b2", b2),                              # (256,32), (1,32)
        ("cw1", cw1.reshape(K * cw1.shape[1], cw1.shape[2])), ("cb1", cb1),
        ("cw2", cw2.reshape(K * cw2.shape[1], cw2.shape[2])), ("cb2", cb2),
        ("cw3", cw3.reshape(K * cw3.shape[1], cw3.shape[2])), ("cb3", cb3),
        ("cw4", cw4.reshape(K * cw4.shape[1], cw4.shape[2])), ("cb4", cb4),
    ]
    blocks, offsets, cur = [], {}, 0
    for name, mat in pieces:
        r, c = mat.shape
        rp = ((r + 7) // 8) * 8
        blk = jnp.zeros((rp, SLAB_LANES), jnp.float32).at[:r, :c].set(mat)
        blocks.append(blk)
        offsets[name] = cur
        cur += rp
    return jnp.concatenate(blocks, axis=0), offsets


def _model_kernel(b, s, off, x_ref, p_ref, out_ref, hp_ref):
    # x_ref:  (b*s, 12)          all tokens, one DMA
    # p_ref:  (rows, 128)        packed parameter slab, one DMA
    # out_ref:(b*s, 128)         lane-dense output slab (cols 5: are zero)
    # hp_ref: (b*(WIDTH+s), 32)  persistent VMEM scratch for the padded time axis
    stride = WIDTH + s

    def mm(a, w):
        # Default MXU precision (bf16 inputs, f32 accumulate) -- intentional;
        # see header comment.
        return jnp.dot(a, w, preferred_element_type=jnp.float32)

    x = x_ref[...]                                             # (b*s, 12)

    # ---- fc1 -> ReLU: two 128-lane output halves (no lane concat needed) ----
    h1a = jnp.maximum(mm(x, p_ref[off["w1a"]:off["w1a"] + 12, :])
                      + p_ref[off["b1a"]:off["b1a"] + 1, :], 0.0)
    h1b = jnp.maximum(mm(x, p_ref[off["w1b"]:off["w1b"] + 12, :])
                      + p_ref[off["b1b"]:off["b1b"] + 1, :], 0.0)

    # ---- fc2: 256-deep contraction split into two 128-deep MXU passes ----
    h2 = (mm(h1a, p_ref[off["w2"]:off["w2"] + 128, 0:32])
          + mm(h1b, p_ref[off["w2"] + 128:off["w2"] + 256, 0:32])
          + p_ref[off["b2"]:off["b2"] + 1, 0:32])              # (b*s, 32)

    # ---- F.pad(x, (WIDTH, 0)) per batch, flattened along one time axis ----
    # Scratch layout: [zeros(WIDTH), h_b0(s), zeros(WIDTH), h_b1(s), ...]
    hp_ref[...] = jnp.zeros_like(hp_ref)
    for i in range(b):                                         # static unroll
        r0 = i * stride + WIDTH                                # multiple of 8
        hp_ref[r0:r0 + s, :] = h2[i * s:(i + 1) * s, :]

    # ---- Conv1d as 5 per-tap matmuls accumulated in f32 (no unfold concat) --
    def conv_layer(slice_fn, l_out, w_off, c_in, b_off, c_out, relu):
        acc = mm(slice_fn(0, l_out), p_ref[w_off:w_off + c_in, 0:c_out])
        for k in range(1, K):
            acc = acc + mm(slice_fn(k, l_out),
                           p_ref[w_off + k * c_in:w_off + (k + 1) * c_in, 0:c_out])
        acc = acc + p_ref[b_off:b_off + 1, 0:c_out]
        return jnp.maximum(acc, 0.0) if relu else acc

    l0 = b * stride
    l1, l2, l3, l4 = (l0 - (K - 1), l0 - 2 * (K - 1),
                      l0 - 3 * (K - 1), l0 - 4 * (K - 1))

    y1 = conv_layer(lambda k, lo: hp_ref[k:k + lo, :], l1,
                    off["cw1"], 32, off["cb1"], 16, True)
    y2 = conv_layer(lambda k, lo, yy=y1: yy[k:k + lo, :], l2,
                    off["cw2"], 16, off["cb2"], 16, True)
    y3 = conv_layer(lambda k, lo, yy=y2: yy[k:k + lo, :], l3,
                    off["cw3"], 16, off["cb3"], 16, True)
    # Last conv: C_out zero-padded to 128 lanes in the slab -> lane-dense result
    y4 = conv_layer(lambda k, lo, yy=y3: yy[k:k + lo, :], l4,
                    off["cw4"], 16, off["cb4"], SLAB_LANES, False)

    # Valid rows of batch i start at i*stride (8-aligned); the WIDTH rows in
    # between are cross-batch boundary garbage and are simply not copied out.
    for i in range(b):                                         # static unroll
        out_ref[i * s:(i + 1) * s, :] = y4[i * stride:i * stride + s, :]


def model_forward(x, params):
    b, s, f = x.shape
    x2 = x.reshape(b * s, f)                  # host-side reshape (free in XLA)
    slab, off = _pack_params(params)          # one packed parameter operand

    # Advisory cost estimate for XLA scheduling.
    l0 = b * (WIDTH + s)
    flops = 2 * b * s * (12 * 256 + 256 * 32)
    flops += 2 * K * ((l0 - 4) * 32 * 16 + (l0 - 8) * 16 * 16
                      + (l0 - 12) * 16 * 16 + (l0 - 16) * 16 * 5)
    bytes_accessed = 4 * (int(x2.size) + int(slab.size) + b * s * SLAB_LANES)
    cost = pl.CostEstimate(flops=flops, transcendentals=0,
                           bytes_accessed=bytes_accessed)

    out2 = pl.pallas_call(
        functools.partial(_model_kernel, b, s, off),
        out_shape=jax.ShapeDtypeStruct((b * s, SLAB_LANES), jnp.float32),
        # No grid: single fused invocation, no pipeline prologue/epilogue.
        in_specs=[pl.BlockSpec(memory_space=pltpu.MemorySpace.VMEM),
                  pl.BlockSpec(memory_space=pltpu.MemorySpace.VMEM)],
        out_specs=pl.BlockSpec(memory_space=pltpu.MemorySpace.VMEM),
        scratch_shapes=[pltpu.VMEM((b * (WIDTH + s), 32), jnp.float32)],
        cost_estimate=cost,
    )(x2, slab)

    return out2[:, :5].reshape(b, s, 5)


def init_params(key):
    ks = jax.random.split(key, 12)
    scale = 0.1
    w1 = scale * jax.random.normal(ks[0], (12, 256), jnp.float32)
    b1 = scale * jax.random.normal(ks[1], (1, 256), jnp.float32)
    w2 = scale * jax.random.normal(ks[2], (256, 32), jnp.float32)
    b2 = scale * jax.random.normal(ks[3], (1, 32), jnp.float32)
    # conv weights stored as (K, C_in, C_out)  (PyTorch (C_out,C_in,K) transposed)
    cw1 = scale * jax.random.normal(ks[4], (K, 32, 16), jnp.float32)
    cb1 = scale * jax.random.normal(ks[5], (1, 16), jnp.float32)
    cw2 = scale * jax.random.normal(ks[6], (K, 16, 16), jnp.float32)
    cb2 = scale * jax.random.normal(ks[7], (1, 16), jnp.float32)
    cw3 = scale * jax.random.normal(ks[8], (K, 16, 16), jnp.float32)
    cb3 = scale * jax.random.normal(ks[9], (1, 16), jnp.float32)
    cw4 = scale * jax.random.normal(ks[10], (K, 16, 5), jnp.float32)
    cb4 = scale * jax.random.normal(ks[11], (1, 5), jnp.float32)
    return [w1, b1, w2, b2, cw1, cb1, cw2, cb2, cw3, cb3, cw4, cb4]


def ref_forward(x, params):
    # plain-JAX reference mirroring the PyTorch forward (same default precision)
    w1, b1, w2, b2, cw1, cb1, cw2, cb2, cw3, cb3, cw4, cb4 = params
    b, s, f = x.shape
    h = jnp.maximum(x.reshape(b * s, f) @ w1 + b1, 0.0)
    h = (h @ w2 + b2).reshape(b, s, 32)
    hp = jnp.pad(h, ((0, 0), (WIDTH, 0), (0, 0)))

    def conv(xin, w, bias):
        l_out = xin.shape[1] - K + 1
        acc = jnp.zeros((xin.shape[0], l_out, w.shape[2]), jnp.float32)
        for k in range(K):
            acc = acc + jnp.einsum('blc,cd->bld', xin[:, k:k + l_out, :], w[k])
        return acc + bias[None]

    y = jnp.maximum(conv(hp, cw1, cb1), 0.0)
    y = jnp.maximum(conv(y, cw2, cb2), 0.0)
    y = jnp.maximum(conv(y, cw3, cb3), 0.0)
    y = conv(y, cw4, cb4)
    return y


if __name__ == "__main__":
    key = jax.random.PRNGKey(0)
    k_x, k_p = jax.random.split(key)

    b, s, f = 2, 8, 12
    x = jax.random.normal(k_x, (b, s, f), jnp.float32)
    params = init_params(k_p)

    out = jax.block_until_ready(model_forward(x, params))

    ref = ref_forward(x, params)
    np.testing.assert_allclose(np.asarray(out), np.asarray(ref),
                               rtol=1e-4, atol=1e-4)

    print("KERNEL_OK")
</pallas_src>

<mosaic_0001>
module attributes {stable_mosaic.version = 11 : i64} {
  func.func @_model_kernel(%arg0: memref<16x12xf32, #tpu.memory_space<vmem>>, %arg1: memref<744x128xf32, #tpu.memory_space<vmem>>, %arg2: memref<16x128xf32, #tpu.memory_space<vmem>>, %arg3: memref<48x32xf32, #tpu.memory_space<vmem>>) attributes {dimension_semantics = [], scalar_prefetch = 0 : i64, scratch_operands = 1 : i64, tpu.core_type = #tpu.core_type<tc>} {
    %c0 = arith.constant 0 : index
    %c0_0 = arith.constant 0 : index
    %0 = vector.load %arg0[%c0, %c0_0] : memref<16x12xf32, #tpu.memory_space<vmem>>, vector<16x12xf32>
    %c0_1 = arith.constant 0 : index
    %c0_2 = arith.constant 0 : index
    %1 = vector.load %arg1[%c0_1, %c0_2] : memref<744x128xf32, #tpu.memory_space<vmem>>, vector<12x128xf32>
    %cst = arith.constant dense<0.000000e+00> : vector<16x128xf32>
    %2 = tpu.matmul %0, %1, %cst {dimension_numbers = #tpu.dot_dimension_numbers<[1], [0], [0], [1], [0, 0, 1, 1], [], []>} : vector<16x12xf32>, vector<12x128xf32>, vector<16x128xf32> -> vector<16x128xf32>
    %c32 = arith.constant 32 : index
    %c0_3 = arith.constant 0 : index
    %3 = vector.load %arg1[%c32, %c0_3] : memref<744x128xf32, #tpu.memory_space<vmem>>, vector<1x128xf32>
    %4 = vector.broadcast %3 : vector<1x128xf32> to vector<16x128xf32>
    %5 = arith.addf %2, %4 : vector<16x128xf32>
    %cst_4 = arith.constant 0.000000e+00 : f32
    %6 = vector.broadcast %cst_4 : f32 to vector<16x128xf32>
    %7 = arith.maximumf %5, %6 : vector<16x128xf32>
    %c16 = arith.constant 16 : index
    %c0_5 = arith.constant 0 : index
    %8 = vector.load %arg1[%c16, %c0_5] : memref<744x128xf32, #tpu.memory_space<vmem>>, vector<12x128xf32>
    %cst_6 = arith.constant dense<0.000000e+00> : vector<16x128xf32>
    %9 = tpu.matmul %0, %8, %cst_6 {dimension_numbers = #tpu.dot_dimension_numbers<[1], [0], [0], [1], [0, 0, 1, 1], [], []>} : vector<16x12xf32>, vector<12x128xf32>, vector<16x128xf32> -> vector<16x128xf32>
    %c40 = arith.constant 40 : index
    %c0_7 = arith.constant 0 : index
    %10 = vector.load %arg1[%c40, %c0_7] : memref<744x128xf32, #tpu.memory_space<vmem>>, vector<1x128xf32>
    %11 = vector.broadcast %10 : vector<1x128xf32> to vector<16x128xf32>
    %12 = arith.addf %9, %11 : vector<16x128xf32>
    %cst_8 = arith.constant 0.000000e+00 : f32
    %13 = vector.broadcast %cst_8 : f32 to vector<16x128xf32>
    %14 = arith.maximumf %12, %13 : vector<16x128xf32>
    %c48 = arith.constant 48 : index
    %c0_9 = arith.constant 0 : index
    %15 = vector.load %arg1[%c48, %c0_9] : memref<744x128xf32, #tpu.memory_space<vmem>>, vector<128x32xf32>
    %cst_10 = arith.constant dense<0.000000e+00> : vector<16x32xf32>
    %16 = tpu.matmul %7, %15, %cst_10 {dimension_numbers = #tpu.dot_dimension_numbers<[1], [0], [0], [1], [0, 0, 1, 1], [], []>} : vector<16x128xf32>, vector<128x32xf32>, vector<16x32xf32> -> vector<16x32xf32>
    %c176 = arith.constant 176 : index
    %c0_11 = arith.constant 0 : index
    %17 = vector.load %arg1[%c176, %c0_11] : memref<744x128xf32, #tpu.memory_space<vmem>>, vector<128x32xf32>
    %cst_12 = arith.constant dense<0.000000e+00> : vector<16x32xf32>
    %18 = tpu.matmul %14, %17, %cst_12 {dimension_numbers = #tpu.dot_dimension_numbers<[1], [0], [0], [1], [0, 0, 1, 1], [], []>} : vector<16x128xf32>, vector<128x32xf32>, vector<16x32xf32> -> vector<16x32xf32>
    %19 = arith.addf %16, %18 : vector<16x32xf32>
    %c304 = arith.constant 304 : index
    %c0_13 = arith.constant 0 : index
    %20 = vector.load %arg1[%c304, %c0_13] : memref<744x128xf32, #tpu.memory_space<vmem>>, vector<1x32xf32>
    %21 = vector.broadcast %20 : vector<1x32xf32> to vector<16x32xf32>
    %22 = arith.addf %19, %21 : vector<16x32xf32>
    %cst_14 = arith.constant 0.000000e+00 : f32
    %23 = vector.broadcast %cst_14 : f32 to vector<48x32xf32>
    %c0_15 = arith.constant 0 : index
    %c0_16 = arith.constant 0 : index
    %24 = vector.load %arg3[%c0_15, %c0_16] : memref<48x32xf32, #tpu.memory_space<vmem>>, vector<48x32xf32>
    tpu.vector_store %arg3[%c0_15, %c0_16], %23 {strides = array<i32>} : memref<48x32xf32, #tpu.memory_space<vmem>>, vector<48x32xf32>,
    %25 = vector.extract_strided_slice %22 {offsets = [0, 0], sizes = [8, 32], strides = [1, 1]} : vector<16x32xf32> to vector<8x32xf32>
    %c16_17 = arith.constant 16 : index
    %c0_18 = arith.constant 0 : index
    %26 = vector.load %arg3[%c16_17, %c0_18] : memref<48x32xf32, #tpu.memory_space<vmem>>, vector<8x32xf32>
    tpu.vector_store %arg3[%c16_17, %c0_18], %25 {strides = array<i32>} : memref<48x32xf32, #tpu.memory_space<vmem>>, vector<8x32xf32>,
    %27 = vector.extract_strided_slice %22 {offsets = [8, 0], sizes = [8, 32], strides = [1, 1]} : vector<16x32xf32> to vector<8x32xf32>
    %c40_19 = arith.constant 40 : index
    %c0_20 = arith.constant 0 : index
    %28 = vector.load %arg3[%c40_19, %c0_20] : memref<48x32xf32, #tpu.memory_space<vmem>>, vector<8x32xf32>
    tpu.vector_store %arg3[%c40_19, %c0_20], %27 {strides = array<i32>} : memref<48x32xf32, #tpu.memory_space<vmem>>, vector<8x32xf32>,
    %c0_21 = arith.constant 0 : index
    %c0_22 = arith.constant 0 : index
    %29 = vector.load %arg3[%c0_21, %c0_22] : memref<48x32xf32, #tpu.memory_space<vmem>>, vector<44x32xf32>
    %c312 = arith.constant 312 : index
    %c0_23 = arith.constant 0 : index
    %30 = vector.load %arg1[%c312, %c0_23] : memref<744x128xf32, #tpu.memory_space<vmem>>, vector<32x16xf32>
    %cst_24 = arith.constant dense<0.000000e+00> : vector<44x16xf32>
    %31 = tpu.matmul %29, %30, %cst_24 {dimension_numbers = #tpu.dot_dimension_numbers<[1], [0], [0], [1], [0, 0, 1, 1], [], []>} : vector<44x32xf32>, vector<32x16xf32>, vector<44x16xf32> -> vector<44x16xf32>
    %c1 = arith.constant 1 : index
    %c0_25 = arith.constant 0 : index
    %32 = vector.load %arg3[%c1, %c0_25] : memref<48x32xf32, #tpu.memory_space<vmem>>, vector<44x32xf32>
    %c344 = arith.constant 344 : index
    %c0_26 = arith.constant 0 : index
    %33 = vector.load %arg1[%c344, %c0_26] : memref<744x128xf32, #tpu.memory_space<vmem>>, vector<32x16xf32>
    %cst_27 = arith.constant dense<0.000000e+00> : vector<44x16xf32>
    %34 = tpu.matmul %32, %33, %cst_27 {dimension_numbers = #tpu.dot_dimension_numbers<[1], [0], [0], [1], [0, 0, 1, 1], [], []>} : vector<44x32xf32>, vector<32x16xf32>, vector<44x16xf32> -> vector<44x16xf32>
    %35 = arith.addf %31, %34 : vector<44x16xf32>
    %c2 = arith.constant 2 : index
    %c0_28 = arith.constant 0 : index
    %36 = vector.load %arg3[%c2, %c0_28] : memref<48x32xf32, #tpu.memory_space<vmem>>, vector<44x32xf32>
    %c376 = arith.constant 376 : index
    %c0_29 = arith.constant 0 : index
    %37 = vector.load %arg1[%c376, %c0_29] : memref<744x128xf32, #tpu.memory_space<vmem>>, vector<32x16xf32>
    %cst_30 = arith.constant dense<0.000000e+00> : vector<44x16xf32>
    %38 = tpu.matmul %36, %37, %cst_30 {dimension_numbers = #tpu.dot_dimension_numbers<[1], [0], [0], [1], [0, 0, 1, 1], [], []>} : vector<44x32xf32>, vector<32x16xf32>, vector<44x16xf32> -> vector<44x16xf32>
    %39 = arith.addf %35, %38 : vector<44x16xf32>
    %c3 = arith.constant 3 : index
    %c0_31 = arith.constant 0 : index
    %40 = vector.load %arg3[%c3, %c0_31] : memref<48x32xf32, #tpu.memory_space<vmem>>, vector<44x32xf32>
    %c408 = arith.constant 408 : index
    %c0_32 = arith.constant 0 : index
    %41 = vector.load %arg1[%c408, %c0_32] : memref<744x128xf32, #tpu.memory_space<vmem>>, vector<32x16xf32>
    %cst_33 = arith.constant dense<0.000000e+00> : vector<44x16xf32>
    %42 = tpu.matmul %40, %41, %cst_33 {dimension_numbers = #tpu.dot_dimension_numbers<[1], [0], [0], [1], [0, 0, 1, 1], [], []>} : vector<44x32xf32>, vector<32x16xf32>, vector<44x16xf32> -> vector<44x16xf32>
    %43 = arith.addf %39, %42 : vector<44x16xf32>
    %c4 = arith.constant 4 : index
    %c0_34 = arith.constant 0 : index
    %44 = vector.load %arg3[%c4, %c0_34] : memref<48x32xf32, #tpu.memory_space<vmem>>, vector<44x32xf32>
    %c440 = arith.constant 440 : index
    %c0_35 = arith.constant 0 : index
    %45 = vector.load %arg1[%c440, %c0_35] : memref<744x128xf32, #tpu.memory_space<vmem>>, vector<32x16xf32>
    %cst_36 = arith.constant dense<0.000000e+00> : vector<44x16xf32>
    %46 = tpu.matmul %44, %45, %cst_36 {dimension_numbers = #tpu.dot_dimension_numbers<[1], [0], [0], [1], [0, 0, 1, 1], [], []>} : vector<44x32xf32>, vector<32x16xf32>, vector<44x16xf32> -> vector<44x16xf32>
    %47 = arith.addf %43, %46 : vector<44x16xf32>
    %c472 = arith.constant 472 : index
    %c0_37 = arith.constant 0 : index
    %48 = vector.load %arg1[%c472, %c0_37] : memref<744x128xf32, #tpu.memory_space<vmem>>, vector<1x16xf32>
    %49 = vector.broadcast %48 : vector<1x16xf32> to vector<44x16xf32>
    %50 = arith.addf %47, %49 : vector<44x16xf32>
    %cst_38 = arith.constant 0.000000e+00 : f32
    %51 = vector.broadcast %cst_38 : f32 to vector<44x16xf32>
    %52 = arith.maximumf %50, %51 : vector<44x16xf32>
    %53 = vector.extract_strided_slice %52 {offsets = [0, 0], sizes = [40, 16], strides = [1, 1]} : vector<44x16xf32> to vector<40x16xf32>
    %c480 = arith.constant 480 : index
    %c0_39 = arith.constant 0 : index
    %54 = vector.load %arg1[%c480, %c0_39] : memref<744x128xf32, #tpu.memory_space<vmem>>, vector<16x16xf32>
    %cst_40 = arith.constant dense<0.000000e+00> : vector<40x16xf32>
    %55 = tpu.matmul %53, %54, %cst_40 {dimension_numbers = #tpu.dot_dimension_numbers<[1], [0], [0], [1], [0, 0, 1, 1], [], []>} : vector<40x16xf32>, vector<16x16xf32>, vector<40x16xf32> -> vector<40x16xf32>
    %56 = vector.extract_strided_slice %52 {offsets = [1, 0], sizes = [40, 16], strides = [1, 1]} : vector<44x16xf32> to vector<40x16xf32>
    %c496 = arith.constant 496 : index
    %c0_41 = arith.constant 0 : index
    %57 = vector.load %arg1[%c496, %c0_41] : memref<744x128xf32, #tpu.memory_space<vmem>>, vector<16x16xf32>
    %cst_42 = arith.constant dense<0.000000e+00> : vector<40x16xf32>
    %58 = tpu.matmul %56, %57, %cst_42 {dimension_numbers = #tpu.dot_dimension_numbers<[1], [0], [0], [1], [0, 0, 1, 1], [], []>} : vector<40x16xf32>, vector<16x16xf32>, vector<40x16xf32> -> vector<40x16xf32>
    %59 = arith.addf %55, %58 : vector<40x16xf32>
    %60 = vector.extract_strided_slice %52 {offsets = [2, 0], sizes = [40, 16], strides = [1, 1]} : vector<44x16xf32> to vector<40x16xf32>
    %c512 = arith.constant 512 : index
    %c0_43 = arith.constant 0 : index
    %61 = vector.load %arg1[%c512, %c0_43] : memref<744x128xf32, #tpu.memory_space<vmem>>, vector<16x16xf32>
    %cst_44 = arith.constant dense<0.000000e+00> : vector<40x16xf32>
    %62 = tpu.matmul %60, %61, %cst_44 {dimension_numbers = #tpu.dot_dimension_numbers<[1], [0], [0], [1], [0, 0, 1, 1], [], []>} : vector<40x16xf32>, vector<16x16xf32>, vector<40x16xf32> -> vector<40x16xf32>
    %63 = arith.addf %59, %62 : vector<40x16xf32>
    %64 = vector.extract_strided_slice %52 {offsets = [3, 0], sizes = [40, 16], strides = [1, 1]} : vector<44x16xf32> to vector<40x16xf32>
    %c528 = arith.constant 528 : index
    %c0_45 = arith.constant 0 : index
    %65 = vector.load %arg1[%c528, %c0_45] : memref<744x128xf32, #tpu.memory_space<vmem>>, vector<16x16xf32>
    %cst_46 = arith.constant dense<0.000000e+00> : vector<40x16xf32>
    %66 = tpu.matmul %64, %65, %cst_46 {dimension_numbers = #tpu.dot_dimension_numbers<[1], [0], [0], [1], [0, 0, 1, 1], [], []>} : vector<40x16xf32>, vector<16x16xf32>, vector<40x16xf32> -> vector<40x16xf32>
    %67 = arith.addf %63, %66 : vector<40x16xf32>
    %68 = vector.extract_strided_slice %52 {offsets = [4, 0], sizes = [40, 16], strides = [1, 1]} : vector<44x16xf32> to vector<40x16xf32>
    %c544 = arith.constant 544 : index
    %c0_47 = arith.constant 0 : index
    %69 = vector.load %arg1[%c544, %c0_47] : memref<744x128xf32, #tpu.memory_space<vmem>>, vector<16x16xf32>
    %cst_48 = arith.constant dense<0.000000e+00> : vector<40x16xf32>
    %70 = tpu.matmul %68, %69, %cst_48 {dimension_numbers = #tpu.dot_dimension_numbers<[1], [0], [0], [1], [0, 0, 1, 1], [], []>} : vector<40x16xf32>, vector<16x16xf32>, vector<40x16xf32> -> vector<40x16xf32>
    %71 = arith.addf %67, %70 : vector<40x16xf32>
    %c560 = arith.constant 560 : index
    %c0_49 = arith.constant 0 : index
    %72 = vector.load %arg1[%c560, %c0_49] : memref<744x128xf32, #tpu.memory_space<vmem>>, vector<1x16xf32>
    %73 = vector.broadcast %72 : vector<1x16xf32> to vector<40x16xf32>
    %74 = arith.addf %71, %73 : vector<40x16xf32>
    %cst_50 = arith.constant 0.000000e+00 : f32
    %75 = vector.broadcast %cst_50 : f32 to vector<40x16xf32>
    %76 = arith.maximumf %74, %75 : vector<40x16xf32>
    %77 = vector.extract_strided_slice %76 {offsets = [0, 0], sizes = [36, 16], strides = [1, 1]} : vector<40x16xf32> to vector<36x16xf32>
    %c568 = arith.constant 568 : index
    %c0_51 = arith.constant 0 : index
    %78 = vector.load %arg1[%c568, %c0_51] : memref<744x128xf32, #tpu.memory_space<vmem>>, vector<16x16xf32>
    %cst_52 = arith.constant dense<0.000000e+00> : vector<36x16xf32>
    %79 = tpu.matmul %77, %78, %cst_52 {dimension_numbers = #tpu.dot_dimension_numbers<[1], [0], [0], [1], [0, 0, 1, 1], [], []>} : vector<36x16xf32>, vector<16x16xf32>, vector<36x16xf32> -> vector<36x16xf32>
    %80 = vector.extract_strided_slice %76 {offsets = [1, 0], sizes = [36, 16], strides = [1, 1]} : vector<40x16xf32> to vector<36x16xf32>
    %c584 = arith.constant 584 : index
    %c0_53 = arith.constant 0 : index
    %81 = vector.load %arg1[%c584, %c0_53] : memref<744x128xf32, #tpu.memory_space<vmem>>, vector<16x16xf32>
    %cst_54 = arith.constant dense<0.000000e+00> : vector<36x16xf32>
    %82 = tpu.matmul %80, %81, %cst_54 {dimension_numbers = #tpu.dot_dimension_numbers<[1], [0], [0], [1], [0, 0, 1, 1], [], []>} : vector<36x16xf32>, vector<16x16xf32>, vector<36x16xf32> -> vector<36x16xf32>
    %83 = arith.addf %79, %82 : vector<36x16xf32>
    %84 = vector.extract_strided_slice %76 {offsets = [2, 0], sizes = [36, 16], strides = [1, 1]} : vector<40x16xf32> to vector<36x16xf32>
    %c600 = arith.constant 600 : index
    %c0_55 = arith.constant 0 : index
    %85 = vector.load %arg1[%c600, %c0_55] : memref<744x128xf32, #tpu.memory_space<vmem>>, vector<16x16xf32>
    %cst_56 = arith.constant dense<0.000000e+00> : vector<36x16xf32>
    %86 = tpu.matmul %84, %85, %cst_56 {dimension_numbers = #tpu.dot_dimension_numbers<[1], [0], [0], [1], [0, 0, 1, 1], [], []>} : vector<36x16xf32>, vector<16x16xf32>, vector<36x16xf32> -> vector<36x16xf32>
    %87 = arith.addf %83, %86 : vector<36x16xf32>
    %88 = vector.extract_strided_slice %76 {offsets = [3, 0], sizes = [36, 16], strides = [1, 1]} : vector<40x16xf32> to vector<36x16xf32>
    %c616 = arith.constant 616 : index
    %c0_57 = arith.constant 0 : index
    %89 = vector.load %arg1[%c616, %c0_57] : memref<744x128xf32, #tpu.memory_space<vmem>>, vector<16x16xf32>
    %cst_58 = arith.constant dense<0.000000e+00> : vector<36x16xf32>
    %90 = tpu.matmul %88, %89, %cst_58 {dimension_numbers = #tpu.dot_dimension_numbers<[1], [0], [0], [1], [0, 0, 1, 1], [], []>} : vector<36x16xf32>, vector<16x16xf32>, vector<36x16xf32> -> vector<36x16xf32>
    %91 = arith.addf %87, %90 : vector<36x16xf32>
    %92 = vector.extract_strided_slice %76 {offsets = [4, 0], sizes = [36, 16], strides = [1, 1]} : vector<40x16xf32> to vector<36x16xf32>
    %c632 = arith.constant 632 : index
    %c0_59 = arith.constant 0 : index
    %93 = vector.load %arg1[%c632, %c0_59] : memref<744x128xf32, #tpu.memory_space<vmem>>, vector<16x16xf32>
    %cst_60 = arith.constant dense<0.000000e+00> : vector<36x16xf32>
    %94 = tpu.matmul %92, %93, %cst_60 {dimension_numbers = #tpu.dot_dimension_numbers<[1], [0], [0], [1], [0, 0, 1, 1], [], []>} : vector<36x16xf32>, vector<16x16xf32>, vector<36x16xf32> -> vector<36x16xf32>
    %95 = arith.addf %91, %94 : vector<36x16xf32>
    %c648 = arith.constant 648 : index
    %c0_61 = arith.constant 0 : index
    %96 = vector.load %arg1[%c648, %c0_61] : memref<744x128xf32, #tpu.memory_space<vmem>>, vector<1x16xf32>
    %97 = vector.broadcast %96 : vector<1x16xf32> to vector<36x16xf32>
    %98 = arith.addf %95, %97 : vector<36x16xf32>
    %cst_62 = arith.constant 0.000000e+00 : f32
    %99 = vector.broadcast %cst_62 : f32 to vector<36x16xf32>
    %100 = arith.maximumf %98, %99 : vector<36x16xf32>
    %101 = vector.extract_strided_slice %100 {offsets = [0, 0], sizes = [32, 16], strides = [1, 1]} : vector<36x16xf32> to vector<32x16xf32>
    %c656 = arith.constant 656 : index
    %c0_63 = arith.constant 0 : index
    %102 = vector.load %arg1[%c656, %c0_63] : memref<744x128xf32, #tpu.memory_space<vmem>>, vector<16x128xf32>
    %cst_64 = arith.constant dense<0.000000e+00> : vector<32x128xf32>
    %103 = tpu.matmul %101, %102, %cst_64 {dimension_numbers = #tpu.dot_dimension_numbers<[1], [0], [0], [1], [0, 0, 1, 1], [], []>} : vector<32x16xf32>, vector<16x128xf32>, vector<32x128xf32> -> vector<32x128xf32>
    %104 = vector.extract_strided_slice %100 {offsets = [1, 0], sizes = [32, 16], strides = [1, 1]} : vector<36x16xf32> to vector<32x16xf32>
    %c672 = arith.constant 672 : index
    %c0_65 = arith.constant 0 : index
    %105 = vector.load %arg1[%c672, %c0_65] : memref<744x128xf32, #tpu.memory_space<vmem>>, vector<16x128xf32>
    %cst_66 = arith.constant dense<0.000000e+00> : vector<32x128xf32>
    %106 = tpu.matmul %104, %105, %cst_66 {dimension_numbers = #tpu.dot_dimension_numbers<[1], [0], [0], [1], [0, 0, 1, 1], [], []>} : vector<32x16xf32>, vector<16x128xf32>, vector<32x128xf32> -> vector<32x128xf32>
    %107 = arith.addf %103, %106 : vector<32x128xf32>
    %108 = vector.extract_strided_slice %100 {offsets = [2, 0], sizes = [32, 16], strides = [1, 1]} : vector<36x16xf32> to vector<32x16xf32>
    %c688 = arith.constant 688 : index
    %c0_67 = arith.constant 0 : index
    %109 = vector.load %arg1[%c688, %c0_67] : memref<744x128xf32, #tpu.memory_space<vmem>>, vector<16x128xf32>
    %cst_68 = arith.constant dense<0.000000e+00> : vector<32x128xf32>
    %110 = tpu.matmul %108, %109, %cst_68 {dimension_numbers = #tpu.dot_dimension_numbers<[1], [0], [0], [1], [0, 0, 1, 1], [], []>} : vector<32x16xf32>, vector<16x128xf32>, vector<32x128xf32> -> vector<32x128xf32>
    %111 = arith.addf %107, %110 : vector<32x128xf32>
    %112 = vector.extract_strided_slice %100 {offsets = [3, 0], sizes = [32, 16], strides = [1, 1]} : vector<36x16xf32> to vector<32x16xf32>
    %c704 = arith.constant 704 : index
    %c0_69 = arith.constant 0 : index
    %113 = vector.load %arg1[%c704, %c0_69] : memref<744x128xf32, #tpu.memory_space<vmem>>, vector<16x128xf32>
    %cst_70 = arith.constant dense<0.000000e+00> : vector<32x128xf32>
    %114 = tpu.matmul %112, %113, %cst_70 {dimension_numbers = #tpu.dot_dimension_numbers<[1], [0], [0], [1], [0, 0, 1, 1], [], []>} : vector<32x16xf32>, vector<16x128xf32>, vector<32x128xf32> -> vector<32x128xf32>
    %115 = arith.addf %111, %114 : vector<32x128xf32>
    %116 = vector.extract_strided_slice %100 {offsets = [4, 0], sizes = [32, 16], strides = [1, 1]} : vector<36x16xf32> to vector<32x16xf32>
    %c720 = arith.constant 720 : index
    %c0_71 = arith.constant 0 : index
    %117 = vector.load %arg1[%c720, %c0_71] : memref<744x128xf32, #tpu.memory_space<vmem>>, vector<16x128xf32>
    %cst_72 = arith.constant dense<0.000000e+00> : vector<32x128xf32>
    %118 = tpu.matmul %116, %117, %cst_72 {dimension_numbers = #tpu.dot_dimension_numbers<[1], [0], [0], [1], [0, 0, 1, 1], [], []>} : vector<32x16xf32>, vector<16x128xf32>, vector<32x128xf32> -> vector<32x128xf32>
    %119 = arith.addf %115, %118 : vector<32x128xf32>
    %c736 = arith.constant 736 : index
    %c0_73 = arith.constant 0 : index
    %120 = vector.load %arg1[%c736, %c0_73] : memref<744x128xf32, #tpu.memory_space<vmem>>, vector<1x128xf32>
    %121 = vector.broadcast %120 : vector<1x128xf32> to vector<32x128xf32>
    %122 = arith.addf %119, %121 : vector<32x128xf32>
    %123 = vector.extract_strided_slice %122 {offsets = [0, 0], sizes = [8, 128], strides = [1, 1]} : vector<32x128xf32> to vector<8x128xf32>
    %c0_74 = arith.constant 0 : index
    %c0_75 = arith.constant 0 : index
    %124 = vector.load %arg2[%c0_74, %c0_75] : memref<16x128xf32, #tpu.memory_space<vmem>>, vector<8x128xf32>
    tpu.vector_store %arg2[%c0_74, %c0_75], %123 {strides = array<i32>} : memref<16x128xf32, #tpu.memory_space<vmem>>, vector<8x128xf32>,
    %125 = vector.extract_strided_slice %122 {offsets = [24, 0], sizes = [8, 128], strides = [1, 1]} : vector<32x128xf32> to vector<8x128xf32>
    %c8 = arith.constant 8 : index
    %c0_76 = arith.constant 0 : index
    %126 = vector.load %arg2[%c8, %c0_76] : memref<16x128xf32, #tpu.memory_space<vmem>>, vector<8x128xf32>
    tpu.vector_store %arg2[%c8, %c0_76], %125 {strides = array<i32>} : memref<16x128xf32, #tpu.memory_space<vmem>>, vector<8x128xf32>,
    return
  }
}

</mosaic_0001>

<llo_original>
// kernel: tpu_custom_call.1
$region0: #{tpu_custom_call.1}
  #allocation0 [shape = 'u32[]', space=smem, size = 0x4, offset = 0x4, fixed_abs, tag = 'smem constant byte address 0x4 - core index']
  #allocation1 [shape = 'u32[144,128]{1,0:T(1,128)}', space=vmem, size = 0x12000, scoped, tag = 'internal scratch']
  #allocation2 [shape = 'f32[48,32]{1,0:T(8,128)}', space=vmem, size = 0x6000, scoped, tag = 'scratch operand']
  %s0 = inlined_call_operand.hbm [shape: f32[16,12], index: 0, kind: input, shape index: {}]
  %s1 = inlined_call_operand.hbm [shape: f32[744,128], index: 1, kind: input, shape index: {}]
  %s2 = inlined_call_operand.hbm [shape: f32[16,128], index: 2, kind: output, shape index: {}]
  %s3 = sld [smem:[#allocation0]]
  $region26: #{tpu_custom_call.1} parent=0
    _
  %s5 = ssub.s32 1, %s3
  %s6 = scalar_select 0, %s5, %s3
  $region1: #{tpu_custom_call.1} parent=0
    #allocation3 [shape = 'u8[8192]{0}', space=vmem, size = 0x2000, scoped, tag = 'input window, operand 0, single buffered']
    #allocation4 [shape = 's32[1]{0}', space=sflag, size = 0x4, scoped, tag = 'scoped memory for tpu_custom_call.1']
    #allocation5 [shape = 's32[1]{0}', space=sflag, size = 0x4, scoped, tag = 'scoped memory for tpu_custom_call.1']
    #allocation6 [shape = 'u8[380928]{0}', space=vmem, size = 0x5d000, scoped, tag = 'input window, operand 1, single buffered']
    #allocation7 [shape = 's32[1]{0}', space=sflag, size = 0x4, scoped, tag = 'scoped memory for tpu_custom_call.1']
    #allocation8 [shape = 'u8[8192]{0}', space=vmem, size = 0x2000, scoped, tag = 'output window, operand 0, single buffered']
    %7 = vsyncpa [#allocation4], 0
    %8 = vsyncpa [#allocation7], 0
    %9 = vsyncpa [#allocation5], 0
    // Predicated region
    $region2: #{tpu_custom_call.1} parent=1 // pred_check
      _
    $region3: #{tpu_custom_call.1} parent=1 // pred_check_branch
      %11 = sbr.rel (0) target = $region5
    $region4: #{tpu_custom_call.1} parent=1 // pred_region
      %s13 = ssub.s32 256, 256
      %14 = vsyncadd [#allocation4], %s13
      %s15 = sshll.u32 [#allocation3], 4
      %s16 = int_to_ptr.vmem [resolvable:$true] %s15
      %21 = dma.hbm_to_vmem [thread:$0]  %s0, 256, %s16, [#allocation4], 128, 128, 8
    $region5: #{tpu_custom_call.1} parent=1 // pred_fallthru
      _
    // Predicated region
    $region6: #{tpu_custom_call.1} parent=1 // pred_check
      _
    $region7: #{tpu_custom_call.1} parent=1 // pred_check_branch
      %23 = sbr.rel (0) target = $region9
    $region8: #{tpu_custom_call.1} parent=1 // pred_region
      %s25 = ssub.s32 11904, 11904
      %26 = vsyncadd [#allocation7], %s25
      %s27 = sshll.u32 [#allocation6], 4
      %s28 = int_to_ptr.vmem [resolvable:$true] %s27
      %33 = dma.hbm_to_vmem [thread:$0]  %s1, 11904, %s28, [#allocation7], 128, 128, 8
    $region9: #{tpu_custom_call.1} parent=1 // pred_fallthru
      _
    // Predicated region
    $region10: #{tpu_custom_call.1} parent=1 // pred_check
      _
    $region11: #{tpu_custom_call.1} parent=1 // pred_check_branch
      %35 = sbr.rel (0) target = $region13
    $region12: #{tpu_custom_call.1} parent=1 // pred_region
      %36 = dma.done [#allocation4], 256
    $region13: #{tpu_custom_call.1} parent=1 // pred_fallthru
      _
    // Predicated region
    $region14: #{tpu_custom_call.1} parent=1 // pred_check
      _
    $region15: #{tpu_custom_call.1} parent=1 // pred_check_branch
      %38 = sbr.rel (0) target = $region17
    $region16: #{tpu_custom_call.1} parent=1 // pred_region
      %39 = dma.done [#allocation7], 11904
    $region17: #{tpu_custom_call.1} parent=1 // pred_fallthru
      _
    %v40 = vld [vmem:[#allocation3] sm:$0xff]
    %v41 = vld [vmem:[#allocation3 + $0x8] sm:$0xff]
    %v42 = vld [vmem:[#allocation6] sm:$0xff]
    %v43 = vld [vmem:[#allocation6 + $0x8] sm:$0xf]
    %v44 = vld [vmem:[#allocation6 + $0x20] sm:$0x1]
    %v45 = vlaneseq
    %v46 = vshrl.u32 %v45, 7
    %v47 = vsub.s32 0, %v46
    %v48 = vrot.slane %v44, %v47
    %vm49 = vcmask 97280
    %v51 = vsel %vm49, %v40, 0
    %v54 = vsel %vm49, %v41, 0
    %vm56 = vcmask 1043456
    %v58 = vsel %vm56, %v43, 0
    %60 = vmatprep.subr.mxu0 0.0
    %61 = vmatpush1.msra.mxu0 0.0
    %62 = vmatprep.subr.mxu0 0.0
    %63 = vmatpush1.msra.mxu0 0.0
    %64 = vmatprep.subr.mxu0 0.0
    %65 = vmatpush1.msra.mxu0 0.0
    %66 = vmatprep.subr.mxu0 0.0
    %67 = vmatpush1.msra.mxu0 0.0
    %68 = vmatprep.subr.mxu0 0.0
    %69 = vmatpush1.msra.mxu0 0.0
    %70 = vmatprep.subr.mxu0 0.0
    %71 = vmatpush1.msra.mxu0 0.0
    %72 = vmatprep.subr.mxu0 0.0
    %73 = vmatpush1.msra.mxu0 0.0
    %74 = vmatprep.subr.mxu0 0.0
    %75 = vmatpush1.msra.mxu0 0.0
    %76 = vmatprep.subr.mxu0 0.0
    %77 = vmatpush1.msra.mxu0 0.0
    %78 = vmatprep.subr.mxu0 0.0
    %79 = vmatpush1.msra.mxu0 0.0
    %80 = vmatprep.subr.mxu0 0.0
    %81 = vmatpush1.msra.mxu0 0.0
    %82 = vmatprep.subr.mxu0 0.0
    %83 = vmatpush1.msra.mxu0 0.0
    %84 = vmatprep.subr.mxu0 0.0
    %85 = vmatpush1.msra.mxu0 0.0
    %86 = vmatprep.subr.mxu0 0.0
    %87 = vmatpush1.msra.mxu0 0.0
    %88 = vmatprep.subr.mxu0 0.0
    %89 = vmatpush1.msra.mxu0 %v58
    %90 = vmatprep.subr.mxu0 0.0
    %91 = vmatpush1.msra.mxu0 %v42
    %92 = vmatprep.subr.mxu0 0.0
    %93 = vmatpush2.msra.mxu0 0.0
    %94 = vmatprep.subr.mxu0 0.0
    %95 = vmatpush2.msra.mxu0 0.0
    %96 = vmatprep.subr.mxu0 0.0
    %97 = vmatpush2.msra.mxu0 0.0
    %98 = vmatprep.subr.mxu0 0.0
    %99 = vmatpush2.msra.mxu0 0.0
    %100 = vmatprep.subr.mxu0 0.0
    %101 = vmatpush2.msra.mxu0 0.0
    %102 = vmatprep.subr.mxu0 0.0
    %103 = vmatpush2.msra.mxu0 0.0
    %104 = vmatprep.subr.mxu0 0.0
    %105 = vmatpush2.msra.mxu0 0.0
    %106 = vmatprep.subr.mxu0 0.0
    %107 = vmatpush2.msra.mxu0 0.0
    %108 = vmatprep.subr.mxu0 0.0
    %109 = vmatpush2.msra.mxu0 0.0
    %110 = vmatprep.subr.mxu0 0.0
    %111 = vmatpush2.msra.mxu0 0.0
    %112 = vmatprep.subr.mxu0 0.0
    %113 = vmatpush2.msra.mxu0 0.0
    %114 = vmatprep.subr.mxu0 0.0
    %115 = vmatpush2.msra.mxu0 0.0
    %116 = vmatprep.subr.mxu0 0.0
    %117 = vmatpush2.msra.mxu0 0.0
    %118 = vmatprep.subr.mxu0 0.0
    %119 = vmatpush2.msra.mxu0 0.0
    %120 = vmatprep.subr.mxu0 0.0
    %121 = vmatpush2.msra.mxu0 0.0
    %122 = vmatprep.subr.mxu0 0.0
    %123 = vmatpush2.msra.mxu0 0.0
    %124 = vmatprep.mubr.f32.mxu0 0.0
    %125 = vmatmul.mubr.f32.gmra.mxu0 %v51
    %v126 = vpop.f32.mrf.mxu0
    %v127 = vadd.f32 %v48, %v126
    %v128 = vpop.f32.mrf.mxu0
    %129 = vmatprep.mubr.f32.mxu0 0.0
    %130 = vmatmul.mubr.f32.gmra.mxu0 %v54
    %v131 = vpop.f32.mrf.mxu0
    %v132 = vadd.f32 %v48, %v131
    %v133 = vpop.f32.mrf.mxu0
    %134 = vdwg.mxu0
    %v135 = vmax.f32 %v127, 0.0
    %v136 = vmax.f32 %v132, 0.0
    %v137 = vld [vmem:[#allocation6 + $0x10] sm:$0xff]
    %v138 = vld [vmem:[#allocation6 + $0x18] sm:$0xf]
    %v139 = vld [vmem:[#allocation6 + $0x28] sm:$0x1]
    %v140 = vlaneseq
    %v141 = vshrl.u32 %v140, 7
    %v142 = vsub.s32 0, %v141
    %v143 = vrot.slane %v139, %v142
    %v145 = vsel %vm56, %v138, 0
    %147 = vmatprep.subr.mxu0 0.0
    %148 = vmatpush1.msra.mxu0 0.0
    %149 = vmatprep.subr.mxu0 0.0
    %150 = vmatpush1.msra.mxu0 0.0
    %151 = vmatprep.subr.mxu0 0.0
    %152 = vmatpush1.msra.mxu0 0.0
    %153 = vmatprep.subr.mxu0 0.0
    %154 = vmatpush1.msra.mxu0 0.0
    %155 = vmatprep.subr.mxu0 0.0
    %156 = vmatpush1.msra.mxu0 0.0
    %157 = vmatprep.subr.mxu0 0.0
    %158 = vmatpush1.msra.mxu0 0.0
    %159 = vmatprep.subr.mxu0 0.0
    %160 = vmatpush1.msra.mxu0 0.0
    %161 = vmatprep.subr.mxu0 0.0
    %162 = vmatpush1.msra.mxu0 0.0
    %163 = vmatprep.subr.mxu0 0.0
    %164 = vmatpush1.msra.mxu0 0.0
    %165 = vmatprep.subr.mxu0 0.0
    %166 = vmatpush1.msra.mxu0 0.0
    %167 = vmatprep.subr.mxu0 0.0
    %168 = vmatpush1.msra.mxu0 0.0
    %169 = vmatprep.subr.mxu0 0.0
    %170 = vmatpush1.msra.mxu0 0.0
    %171 = vmatprep.subr.mxu0 0.0
    %172 = vmatpush1.msra.mxu0 0.0
    %173 = vmatprep.subr.mxu0 0.0
    %174 = vmatpush1.msra.mxu0 0.0
    %175 = vmatprep.subr.mxu0 0.0
    %176 = vmatpush1.msra.mxu0 %v145
    %177 = vmatprep.subr.mxu0 0.0
    %178 = vmatpush1.msra.mxu0 %v137
    %179 = vmatprep.subr.mxu0 0.0
    %180 = vmatpush2.msra.mxu0 0.0
    %181 = vmatprep.subr.mxu0 0.0
    %182 = vmatpush2.msra.mxu0 0.0
    %183 = vmatprep.subr.mxu0 0.0
    %184 = vmatpush2.msra.mxu0 0.0
    %185 = vmatprep.subr.mxu0 0.0
    %186 = vmatpush2.msra.mxu0 0.0
    %187 = vmatprep.subr.mxu0 0.0
    %188 = vmatpush2.msra.mxu0 0.0
    %189 = vmatprep.subr.mxu0 0.0
    %190 = vmatpush2.msra.mxu0 0.0
    %191 = vmatprep.subr.mxu0 0.0
    %192 = vmatpush2.msra.mxu0 0.0
    %193 = vmatprep.subr.mxu0 0.0
    %194 = vmatpush2.msra.mxu0 0.0
    %195 = vmatprep.subr.mxu0 0.0
    %196 = vmatpush2.msra.mxu0 0.0
    %197 = vmatprep.subr.mxu0 0.0
    %198 = vmatpush2.msra.mxu0 0.0
    %199 = vmatprep.subr.mxu0 0.0
    %200 = vmatpush2.msra.mxu0 0.0
    %201 = vmatprep.subr.mxu0 0.0
    %202 = vmatpush2.msra.mxu0 0.0
    %203 = vmatprep.subr.mxu0 0.0
    %204 = vmatpush2.msra.mxu0 0.0
    %205 = vmatprep.subr.mxu0 0.0
    %206 = vmatpush2.msra.mxu0 0.0
    %207 = vmatprep.subr.mxu0 0.0
    %208 = vmatpush2.msra.mxu0 0.0
    %209 = vmatprep.subr.mxu0 0.0
    %210 = vmatpush2.msra.mxu0 0.0
    %211 = vmatprep.mubr.f32.mxu0 0.0
    %212 = vmatmul.mubr.f32.gmra.mxu0 %v51
    %v213 = vpop.f32.mrf.mxu0
    %v214 = vadd.f32 %v143, %v213
    %v215 = vpop.f32.mrf.mxu0
    %216 = vmatprep.mubr.f32.mxu0 0.0
    %217 = vmatmul.mubr.f32.gmra.mxu0 %v54
    %v218 = vpop.f32.mrf.mxu0
    %v219 = vadd.f32 %v143, %v218
    %v220 = vpop.f32.mrf.mxu0
    %221 = vdwg.mxu0
    %v222 = vmax.f32 %v214, 0.0
    %v223 = vmax.f32 %v219, 0.0
    %v224 = vld [vmem:[#allocation6 + $0x30] sm:$0xff]
    %v225 = vld [vmem:[#allocation6 + $0x38] sm:$0xff]
    %v226 = vld [vmem:[#allocation6 + $0x40] sm:$0xff]
    %v227 = vld [vmem:[#allocation6 + $0x48] sm:$0xff]
    %v228 = vld [vmem:[#allocation6 + $0x50] sm:$0xff]
    %v229 = vld [vmem:[#allocation6 + $0x58] sm:$0xff]
    %v230 = vld [vmem:[#allocation6 + $0x60] sm:$0xff]
    %v231 = vld [vmem:[#allocation6 + $0x68] sm:$0xff]
    %v232 = vld [vmem:[#allocation6 + $0x70] sm:$0xff]
    %v233 = vld [vmem:[#allocation6 + $0x78] sm:$0xff]
    %v234 = vld [vmem:[#allocation6 + $0x80] sm:$0xff]
    %v235 = vld [vmem:[#allocation6 + $0x88] sm:$0xff]
    %v236 = vld [vmem:[#allocation6 + $0x90] sm:$0xff]
    %v237 = vld [vmem:[#allocation6 + $0x98] sm:$0xff]
    %v238 = vld [vmem:[#allocation6 + $0xa0] sm:$0xff]
    %v239 = vld [vmem:[#allocation6 + $0xa8] sm:$0xff]
    %v240 = vld [vmem:[#allocation6 + $0xb0] sm:$0xff]
    %v241 = vld [vmem:[#allocation6 + $0xb8] sm:$0xff]
    %v242 = vld [vmem:[#allocation6 + $0xc0] sm:$0xff]
    %v243 = vld [vmem:[#allocation6 + $0xc8] sm:$0xff]
    %v244 = vld [vmem:[#allocation6 + $0xd0] sm:$0xff]
    %v245 = vld [vmem:[#allocation6 + $0xd8] sm:$0xff]
    %v246 = vld [vmem:[#allocation6 + $0xe0] sm:$0xff]
    %v247 = vld [vmem:[#allocation6 + $0xe8] sm:$0xff]
    %v248 = vld [vmem:[#allocation6 + $0xf0] sm:$0xff]
    %v249 = vld [vmem:[#allocation6 + $0xf8] sm:$0xff]
    %v250 = vld [vmem:[#allocation6 + $0x100] sm:$0xff]
    %v251 = vld [vmem:[#allocation6 + $0x108] sm:$0xff]
    %v252 = vld [vmem:[#allocation6 + $0x110] sm:$0xff]
    %v253 = vld [vmem:[#allocation6 + $0x118] sm:$0xff]
    %v254 = vld [vmem:[#allocation6 + $0x120] sm:$0xff]
    %v255 = vld [vmem:[#allocation6 + $0x128] sm:$0xff]
    %256 = vmatprep.subr.mxu0 0.0
    %257 = vmatpush1.msra.mxu0 %v255
    %258 = vmatprep.subr.mxu0 0.0
    %259 = vmatpush1.msra.mxu0 %v254
    %260 = vmatprep.subr.mxu0 0.0
    %261 = vmatpush1.msra.mxu0 %v253
    %262 = vmatprep.subr.mxu0 0.0
    %263 = vmatpush1.msra.mxu0 %v252
    %264 = vmatprep.subr.mxu0 0.0
    %265 = vmatpush1.msra.mxu0 %v251
    %266 = vmatprep.subr.mxu0 0.0
    %267 = vmatpush1.msra.mxu0 %v250
    %268 = vmatprep.subr.mxu0 0.0
    %269 = vmatpush1.msra.mxu0 %v249
    %270 = vmatprep.subr.mxu0 0.0
    %271 = vmatpush1.msra.mxu0 %v248
    %272 = vmatprep.subr.mxu0 0.0
    %273 = vmatpush1.msra.mxu0 %v247
    %274 = vmatprep.subr.mxu0 0.0
    %275 = vmatpush1.msra.mxu0 %v246
    %276 = vmatprep.subr.mxu0 0.0
    %277 = vmatpush1.msra.mxu0 %v245
    %278 = vmatprep.subr.mxu0 0.0
    %279 = vmatpush1.msra.mxu0 %v244
    %280 = vmatprep.subr.mxu0 0.0
    %281 = vmatpush1.msra.mxu0 %v243
    %282 = vmatprep.subr.mxu0 0.0
    %283 = vmatpush1.msra.mxu0 %v242
    %284 = vmatprep.subr.mxu0 0.0
    %285 = vmatpush1.msra.mxu0 %v241
    %286 = vmatprep.subr.mxu0 0.0
    %287 = vmatpush1.msra.mxu0 %v240
    %288 = vmatprep.subr.mxu0 0.0
    %289 = vmatpush2.msra.mxu0 0.0
    %290 = vmatprep.subr.mxu0 0.0
    %291 = vmatpush2.msra.mxu0 0.0
    %292 = vmatprep.subr.mxu0 0.0
    %293 = vmatpush2.msra.mxu0 0.0
    %294 = vmatprep.subr.mxu0 0.0
    %295 = vmatpush2.msra.mxu0 0.0
    %296 = vmatprep.subr.mxu0 0.0
    %297 = vmatpush2.msra.mxu0 0.0
    %298 = vmatprep.subr.mxu0 0.0
    %299 = vmatpush2.msra.mxu0 0.0
    %300 = vmatprep.subr.mxu0 0.0
    %301 = vmatpush2.msra.mxu0 0.0
    %302 = vmatprep.subr.mxu0 0.0
    %303 = vmatpush2.msra.mxu0 0.0
    %304 = vmatprep.subr.mxu0 0.0
    %305 = vmatpush2.msra.mxu0 0.0
    %306 = vmatprep.subr.mxu0 0.0
    %307 = vmatpush2.msra.mxu0 0.0
    %308 = vmatprep.subr.mxu0 0.0
    %309 = vmatpush2.msra.mxu0 0.0
    %310 = vmatprep.subr.mxu0 0.0
    %311 = vmatpush2.msra.mxu0 0.0
    %312 = vmatprep.subr.mxu0 0.0
    %313 = vmatpush2.msra.mxu0 0.0
    %314 = vmatprep.subr.mxu0 0.0
    %315 = vmatpush2.msra.mxu0 0.0
    %316 = vmatprep.subr.mxu0 0.0
    %317 = vmatpush2.msra.mxu0 0.0
    %318 = vmatprep.subr.mxu0 0.0
    %319 = vmatpush2.msra.mxu0 0.0
    %320 = vmatprep.mubr.f32.mxu0 0.0
    %321 = vmatmul.mubr.f32.gmra.mxu0 %v222
    %v322 = vpop.f32.mrf.mxu0
    %v323 = vadd.f32 0.0, %v322
    %v324 = vpop.f32.mrf.mxu0
    %325 = vmatprep.mubr.f32.mxu0 0.0
    %326 = vmatmul.mubr.f32.gmra.mxu0 %v223
    %v327 = vpop.f32.mrf.mxu0
    %v328 = vadd.f32 0.0, %v327
    %v329 = vpop.f32.mrf.mxu0
    %330 = vdwg.mxu0
    %331 = vmatprep.subr.mxu0 0.0
    %332 = vmatpush1.msra.mxu0 %v239
    %333 = vmatprep.subr.mxu0 0.0
    %334 = vmatpush1.msra.mxu0 %v238
    %335 = vmatprep.subr.mxu0 0.0
    %336 = vmatpush1.msra.mxu0 %v237
    %337 = vmatprep.subr.mxu0 0.0
    %338 = vmatpush1.msra.mxu0 %v236
    %339 = vmatprep.subr.mxu0 0.0
    %340 = vmatpush1.msra.mxu0 %v235
    %341 = vmatprep.subr.mxu0 0.0
    %342 = vmatpush1.msra.mxu0 %v234
    %343 = vmatprep.subr.mxu0 0.0
    %344 = vmatpush1.msra.mxu0 %v233
    %345 = vmatprep.subr.mxu0 0.0
    %346 = vmatpush1.msra.mxu0 %v232
    %347 = vmatprep.subr.mxu0 0.0
    %348 = vmatpush1.msra.mxu0 %v231
    %349 = vmatprep.subr.mxu0 0.0
    %350 = vmatpush1.msra.mxu0 %v230
    %351 = vmatprep.subr.mxu0 0.0
    %352 = vmatpush1.msra.mxu0 %v229
    %353 = vmatprep.subr.mxu0 0.0
    %354 = vmatpush1.msra.mxu0 %v228
    %355 = vmatprep.subr.mxu0 0.0
    %356 = vmatpush1.msra.mxu0 %v227
    %357 = vmatprep.subr.mxu0 0.0
    %358 = vmatpush1.msra.mxu0 %v226
    %359 = vmatprep.subr.mxu0 0.0
    %360 = vmatpush1.msra.mxu0 %v225
    %361 = vmatprep.subr.mxu0 0.0
    %362 = vmatpush1.msra.mxu0 %v224
    %363 = vmatprep.subr.mxu0 0.0
    %364 = vmatpush2.msra.mxu0 0.0
    %365 = vmatprep.subr.mxu0 0.0
    %366 = vmatpush2.msra.mxu0 0.0
    %367 = vmatprep.subr.mxu0 0.0
    %368 = vmatpush2.msra.mxu0 0.0
    %369 = vmatprep.subr.mxu0 0.0
    %370 = vmatpush2.msra.mxu0 0.0
    %371 = vmatprep.subr.mxu0 0.0
    %372 = vmatpush2.msra.mxu0 0.0
    %373 = vmatprep.subr.mxu0 0.0
    %374 = vmatpush2.msra.mxu0 0.0
    %375 = vmatprep.subr.mxu0 0.0
    %376 = vmatpush2.msra.mxu0 0.0
    %377 = vmatprep.subr.mxu0 0.0
    %378 = vmatpush2.msra.mxu0 0.0
    %379 = vmatprep.subr.mxu0 0.0
    %380 = vmatpush2.msra.mxu0 0.0
    %381 = vmatprep.subr.mxu0 0.0
    %382 = vmatpush2.msra.mxu0 0.0
    %383 = vmatprep.subr.mxu0 0.0
    %384 = vmatpush2.msra.mxu0 0.0
    %385 = vmatprep.subr.mxu0 0.0
    %386 = vmatpush2.msra.mxu0 0.0
    %387 = vmatprep.subr.mxu0 0.0
    %388 = vmatpush2.msra.mxu0 0.0
    %389 = vmatprep.subr.mxu0 0.0
    %390 = vmatpush2.msra.mxu0 0.0
    %391 = vmatprep.subr.mxu0 0.0
    %392 = vmatpush2.msra.mxu0 0.0
    %393 = vmatprep.subr.mxu0 0.0
    %394 = vmatpush2.msra.mxu0 0.0
    %395 = vmatprep.mubr.f32.mxu0 0.0
    %396 = vmatmul.mubr.f32.gmra.mxu0 %v135
    %v397 = vpop.f32.mrf.mxu0
    %v398 = vadd.f32 %v323, %v397
    %v399 = vpop.f32.mrf.mxu0
    %400 = vmatprep.mubr.f32.mxu0 0.0
    %401 = vmatmul.mubr.f32.gmra.mxu0 %v136
    %v402 = vpop.f32.mrf.mxu0
    %v403 = vadd.f32 %v328, %v402
    %v404 = vpop.f32.mrf.mxu0
    %405 = vdwg.mxu0
    %v406 = vld [vmem:[#allocation6 + $0x130] sm:$0x1]
    %v407 = vlaneseq
    %v408 = vshrl.u32 %v407, 7
    %v409 = vsub.s32 0, %v408
    %v410 = vrot.slane %v406, %v409
    %v411 = vadd.f32 %v398, %v410
    %v412 = vadd.f32 %v403, %v410
    %vm413 = vcmask 261120
    %414 = vst.msk [vmem:[#allocation2] sm:$0xff] %vm413, 0.0
    %415 = vst.msk [vmem:[#allocation2 + $0x8] sm:$0xff] %vm413, 0.0
    %416 = vst.msk [vmem:[#allocation2 + $0x10] sm:$0xff] %vm413, 0.0
    %417 = vst.msk [vmem:[#allocation2 + $0x18] sm:$0xff] %vm413, 0.0
    %418 = vst.msk [vmem:[#allocation2 + $0x20] sm:$0xff] %vm413, 0.0
    %419 = vst.msk [vmem:[#allocation2 + $0x28] sm:$0xff] %vm413, 0.0
    %420 = vst.msk [vmem:[#allocation2 + $0x10] sm:$0xff] %vm413, %v411
    %421 = vst.msk [vmem:[#allocation2 + $0x28] sm:$0xff] %vm413, %v412
    %v422 = vld [vmem:[#allocation2] sm:$0xff]
    %v423 = vld [vmem:[#allocation2 + $0x8] sm:$0xff]
    %v424 = vld [vmem:[#allocation2 + $0x10] sm:$0xff]
    %v425 = vld [vmem:[#allocation2 + $0x18] sm:$0xff]
    %v426 = vld [vmem:[#allocation2 + $0x20] sm:$0xff]
    %v427 = vld [vmem:[#allocation2 + $0x28] sm:$0xf]
    %v428 = vld [vmem:[#allocation6 + $0x138] sm:$0xff]
    %v429 = vld [vmem:[#allocation6 + $0x140] sm:$0xff]
    %v430 = vld [vmem:[#allocation6 + $0x148] sm:$0xff]
    %v431 = vld [vmem:[#allocation6 + $0x150] sm:$0xff]
    %v432 = vld [vmem:[#allocation2 + $0x1] sm:$0xff]
    %v433 = vld [vmem:[#allocation2 + $0x9] sm:$0xff]
    %v434 = vld [vmem:[#allocation2 + $0x11] sm:$0xff]
    %v435 = vld [vmem:[#allocation2 + $0x19] sm:$0xff]
    %v436 = vld [vmem:[#allocation2 + $0x21] sm:$0xff]
    %v437 = vld [vmem:[#allocation2 + $0x29] sm:$0xf]
    %v438 = vld [vmem:[#allocation6 + $0x158] sm:$0xff]
    %v439 = vld [vmem:[#allocation6 + $0x160] sm:$0xff]
    %v440 = vld [vmem:[#allocation6 + $0x168] sm:$0xff]
    %v441 = vld [vmem:[#allocation6 + $0x170] sm:$0xff]
    %v443 = vsel %vm413, %v432, 0
    %v446 = vsel %vm413, %v433, 0
    %v449 = vsel %vm413, %v434, 0
    %v452 = vsel %vm413, %v435, 0
    %v455 = vsel %vm413, %v436, 0
    %v458 = vsel %vm413, %v437, 0
    %460 = vmatprep.subr.mxu0 0.0
    %461 = vmatpush1.msra.mxu0 0.0
    %462 = vmatprep.subr.mxu0 0.0
    %463 = vmatpush1.msra.mxu0 0.0
    %464 = vmatprep.subr.mxu0 0.0
    %465 = vmatpush1.msra.mxu0 0.0
    %466 = vmatprep.subr.mxu0 0.0
    %467 = vmatpush1.msra.mxu0 0.0
    %468 = vmatprep.subr.mxu0 0.0
    %469 = vmatpush1.msra.mxu0 0.0
    %470 = vmatprep.subr.mxu0 0.0
    %471 = vmatpush1.msra.mxu0 0.0
    %472 = vmatprep.subr.mxu0 0.0
    %473 = vmatpush1.msra.mxu0 0.0
    %474 = vmatprep.subr.mxu0 0.0
    %475 = vmatpush1.msra.mxu0 0.0
    %476 = vmatprep.subr.mxu0 0.0
    %477 = vmatpush1.msra.mxu0 0.0
    %478 = vmatprep.subr.mxu0 0.0
    %479 = vmatpush1.msra.mxu0 0.0
    %480 = vmatprep.subr.mxu0 0.0
    %481 = vmatpush1.msra.mxu0 0.0
    %482 = vmatprep.subr.mxu0 0.0
    %483 = vmatpush1.msra.mxu0 0.0
    %484 = vmatprep.subr.mxu0 0.0
    %485 = vmatpush1.msra.mxu0 %v441
    %486 = vmatprep.subr.mxu0 0.0
    %487 = vmatpush1.msra.mxu0 %v440
    %488 = vmatprep.subr.mxu0 0.0
    %489 = vmatpush1.msra.mxu0 %v439
    %490 = vmatprep.subr.mxu0 0.0
    %491 = vmatpush1.msra.mxu0 %v438
    %492 = vmatprep.subr.mxu0 0.0
    %493 = vmatpush2.msra.mxu0 0.0
    %494 = vmatprep.subr.mxu0 0.0
    %495 = vmatpush2.msra.mxu0 0.0
    %496 = vmatprep.subr.mxu0 0.0
    %497 = vmatpush2.msra.mxu0 0.0
    %498 = vmatprep.subr.mxu0 0.0
    %499 = vmatpush2.msra.mxu0 0.0
    %500 = vmatprep.subr.mxu0 0.0
    %501 = vmatpush2.msra.mxu0 0.0
    %502 = vmatprep.subr.mxu0 0.0
    %503 = vmatpush2.msra.mxu0 0.0
    %504 = vmatprep.subr.mxu0 0.0
    %505 = vmatpush2.msra.mxu0 0.0
    %506 = vmatprep.subr.mxu0 0.0
    %507 = vmatpush2.msra.mxu0 0.0
    %508 = vmatprep.subr.mxu0 0.0
    %509 = vmatpush2.msra.mxu0 0.0
    %510 = vmatprep.subr.mxu0 0.0
    %511 = vmatpush2.msra.mxu0 0.0
    %512 = vmatprep.subr.mxu0 0.0
    %513 = vmatpush2.msra.mxu0 0.0
    %514 = vmatprep.subr.mxu0 0.0
    %515 = vmatpush2.msra.mxu0 0.0
    %516 = vmatprep.subr.mxu0 0.0
    %517 = vmatpush2.msra.mxu0 0.0
    %518 = vmatprep.subr.mxu0 0.0
    %519 = vmatpush2.msra.mxu0 0.0
    %520 = vmatprep.subr.mxu0 0.0
    %521 = vmatpush2.msra.mxu0 0.0
    %522 = vmatprep.subr.mxu0 0.0
    %523 = vmatpush2.msra.mxu0 0.0
    %524 = vmatprep.mubr.f32.mxu0 0.0
    %525 = vmatmul.mubr.f32.gmra.mxu0 %v443
    %v526 = vpop.f32.mrf.mxu0
    %v527 = vadd.f32 0.0, %v526
    %v528 = vpop.f32.mrf.mxu0
    %529 = vmatprep.mubr.f32.mxu0 0.0
    %530 = vmatmul.mubr.f32.gmra.mxu0 %v446
    %v531 = vpop.f32.mrf.mxu0
    %v532 = vadd.f32 0.0, %v531
    %v533 = vpop.f32.mrf.mxu0
    %534 = vmatprep.mubr.f32.mxu0 0.0
    %535 = vmatmul.mubr.f32.gmra.mxu0 %v449
    %v536 = vpop.f32.mrf.mxu0
    %v537 = vadd.f32 0.0, %v536
    %v538 = vpop.f32.mrf.mxu0
    %539 = vmatprep.mubr.f32.mxu0 0.0
    %540 = vmatmul.mubr.f32.gmra.mxu0 %v452
    %v541 = vpop.f32.mrf.mxu0
    %v542 = vadd.f32 0.0, %v541
    %v543 = vpop.f32.mrf.mxu0
    %544 = vmatprep.mubr.f32.mxu0 0.0
    %545 = vmatmul.mubr.f32.gmra.mxu0 %v455
    %v546 = vpop.f32.mrf.mxu0
    %v547 = vadd.f32 0.0, %v546
    %v548 = vpop.f32.mrf.mxu0
    %549 = vmatprep.mubr.f32.mxu0 0.0
    %550 = vmatmul.mubr.f32.gmra.mxu0 %v458
    %v551 = vpop.f32.mrf.mxu0
    %v552 = vadd.f32 0.0, %v551
    %v553 = vpop.f32.mrf.mxu0
    %554 = vdwg.mxu0
    %v556 = vsel %vm413, %v422, 0
    %v559 = vsel %vm413, %v423, 0
    %v562 = vsel %vm413, %v424, 0
    %v565 = vsel %vm413, %v425, 0
    %v568 = vsel %vm413, %v426, 0
    %v571 = vsel %vm413, %v427, 0
    %573 = vmatprep.subr.mxu0 0.0
    %574 = vmatpush1.msra.mxu0 0.0
    %575 = vmatprep.subr.mxu0 0.0
    %576 = vmatpush1.msra.mxu0 0.0
    %577 = vmatprep.subr.mxu0 0.0
    %578 = vmatpush1.msra.mxu0 0.0
    %579 = vmatprep.subr.mxu0 0.0
    %580 = vmatpush1.msra.mxu0 0.0
    %581 = vmatprep.subr.mxu0 0.0
    %582 = vmatpush1.msra.mxu0 0.0
    %583 = vmatprep.subr.mxu0 0.0
    %584 = vmatpush1.msra.mxu0 0.0
    %585 = vmatprep.subr.mxu0 0.0
    %586 = vmatpush1.msra.mxu0 0.0
    %587 = vmatprep.subr.mxu0 0.0
    %588 = vmatpush1.msra.mxu0 0.0
    %589 = vmatprep.subr.mxu0 0.0
    %590 = vmatpush1.msra.mxu0 0.0
    %591 = vmatprep.subr.mxu0 0.0
    %592 = vmatpush1.msra.mxu0 0.0
    %593 = vmatprep.subr.mxu0 0.0
    %594 = vmatpush1.msra.mxu0 0.0
    %595 = vmatprep.subr.mxu0 0.0
    %596 = vmatpush1.msra.mxu0 0.0
    %597 = vmatprep.subr.mxu0 0.0
    %598 = vmatpush1.msra.mxu0 %v431
    %599 = vmatprep.subr.mxu0 0.0
    %600 = vmatpush1.msra.mxu0 %v430
    %601 = vmatprep.subr.mxu0 0.0
    %602 = vmatpush1.msra.mxu0 %v429
    %603 = vmatprep.subr.mxu0 0.0
    %604 = vmatpush1.msra.mxu0 %v428
    %605 = vmatprep.subr.mxu0 0.0
    %606 = vmatpush2.msra.mxu0 0.0
    %607 = vmatprep.subr.mxu0 0.0
    %608 = vmatpush2.msra.mxu0 0.0
    %609 = vmatprep.subr.mxu0 0.0
    %610 = vmatpush2.msra.mxu0 0.0
    %611 = vmatprep.subr.mxu0 0.0
    %612 = vmatpush2.msra.mxu0 0.0
    %613 = vmatprep.subr.mxu0 0.0
    %614 = vmatpush2.msra.mxu0 0.0
    %615 = vmatprep.subr.mxu0 0.0
    %616 = vmatpush2.msra.mxu0 0.0
    %617 = vmatprep.subr.mxu0 0.0
    %618 = vmatpush2.msra.mxu0 0.0
    %619 = vmatprep.subr.mxu0 0.0
    %620 = vmatpush2.msra.mxu0 0.0
    %621 = vmatprep.subr.mxu0 0.0
    %622 = vmatpush2.msra.mxu0 0.0
    %623 = vmatprep.subr.mxu0 0.0
    %624 = vmatpush2.msra.mxu0 0.0
    %625 = vmatprep.subr.mxu0 0.0
    %626 = vmatpush2.msra.mxu0 0.0
    %627 = vmatprep.subr.mxu0 0.0
    %628 = vmatpush2.msra.mxu0 0.0
    %629 = vmatprep.subr.mxu0 0.0
    %630 = vmatpush2.msra.mxu0 0.0
    %631 = vmatprep.subr.mxu0 0.0
    %632 = vmatpush2.msra.mxu0 0.0
    %633 = vmatprep.subr.mxu0 0.0
    %634 = vmatpush2.msra.mxu0 0.0
    %635 = vmatprep.subr.mxu0 0.0
    %636 = vmatpush2.msra.mxu0 0.0
    %637 = vmatprep.mubr.f32.mxu0 0.0
    %638 = vmatmul.mubr.f32.gmra.mxu0 %v556
    %v639 = vpop.f32.mrf.mxu0
    %v640 = vadd.f32 %v527, %v639
    %v641 = vpop.f32.mrf.mxu0
    %642 = vmatprep.mubr.f32.mxu0 0.0
    %643 = vmatmul.mubr.f32.gmra.mxu0 %v559
    %v644 = vpop.f32.mrf.mxu0
    %v645 = vadd.f32 %v532, %v644
    %v646 = vpop.f32.mrf.mxu0
    %647 = vmatprep.mubr.f32.mxu0 0.0
    %648 = vmatmul.mubr.f32.gmra.mxu0 %v562
    %v649 = vpop.f32.mrf.mxu0
    %v650 = vadd.f32 %v537, %v649
    %v651 = vpop.f32.mrf.mxu0
    %652 = vmatprep.mubr.f32.mxu0 0.0
    %653 = vmatmul.mubr.f32.gmra.mxu0 %v565
    %v654 = vpop.f32.mrf.mxu0
    %v655 = vadd.f32 %v542, %v654
    %v656 = vpop.f32.mrf.mxu0
    %657 = vmatprep.mubr.f32.mxu0 0.0
    %658 = vmatmul.mubr.f32.gmra.mxu0 %v568
    %v659 = vpop.f32.mrf.mxu0
    %v660 = vadd.f32 %v547, %v659
    %v661 = vpop.f32.mrf.mxu0
    %662 = vmatprep.mubr.f32.mxu0 0.0
    %663 = vmatmul.mubr.f32.gmra.mxu0 %v571
    %v664 = vpop.f32.mrf.mxu0
    %v665 = vadd.f32 %v552, %v664
    %v666 = vpop.f32.mrf.mxu0
    %667 = vdwg.mxu0
    %v668 = vld [vmem:[#allocation2 + $0x2] sm:$0xff]
    %v669 = vld [vmem:[#allocation2 + $0xa] sm:$0xff]
    %v670 = vld [vmem:[#allocation2 + $0x12] sm:$0xff]
    %v671 = vld [vmem:[#allocation2 + $0x1a] sm:$0xff]
    %v672 = vld [vmem:[#allocation2 + $0x22] sm:$0xff]
    %v673 = vld [vmem:[#allocation2 + $0x2a] sm:$0xf]
    %v674 = vld [vmem:[#allocation6 + $0x178] sm:$0xff]
    %v675 = vld [vmem:[#allocation6 + $0x180] sm:$0xff]
    %v676 = vld [vmem:[#allocation6 + $0x188] sm:$0xff]
    %v677 = vld [vmem:[#allocation6 + $0x190] sm:$0xff]
    %v679 = vsel %vm413, %v668, 0
    %v682 = vsel %vm413, %v669, 0
    %v685 = vsel %vm413, %v670, 0
    %v688 = vsel %vm413, %v671, 0
    %v691 = vsel %vm413, %v672, 0
    %v694 = vsel %vm413, %v673, 0
    %696 = vmatprep.subr.mxu0 0.0
    %697 = vmatpush1.msra.mxu0 0.0
    %698 = vmatprep.subr.mxu0 0.0
    %699 = vmatpush1.msra.mxu0 0.0
    %700 = vmatprep.subr.mxu0 0.0
    %701 = vmatpush1.msra.mxu0 0.0
    %702 = vmatprep.subr.mxu0 0.0
    %703 = vmatpush1.msra.mxu0 0.0
    %704 = vmatprep.subr.mxu0 0.0
    %705 = vmatpush1.msra.mxu0 0.0
    %706 = vmatprep.subr.mxu0 0.0
    %707 = vmatpush1.msra.mxu0 0.0
    %708 = vmatprep.subr.mxu0 0.0
    %709 = vmatpush1.msra.mxu0 0.0
    %710 = vmatprep.subr.mxu0 0.0
    %711 = vmatpush1.msra.mxu0 0.0
    %712 = vmatprep.subr.mxu0 0.0
    %713 = vmatpush1.msra.mxu0 0.0
    %714 = vmatprep.subr.mxu0 0.0
    %715 = vmatpush1.msra.mxu0 0.0
    %716 = vmatprep.subr.mxu0 0.0
    %717 = vmatpush1.msra.mxu0 0.0
    %718 = vmatprep.subr.mxu0 0.0
    %719 = vmatpush1.msra.mxu0 0.0
    %720 = vmatprep.subr.mxu0 0.0
    %721 = vmatpush1.msra.mxu0 %v677
    %722 = vmatprep.subr.mxu0 0.0
    %723 = vmatpush1.msra.mxu0 %v676
    %724 = vmatprep.subr.mxu0 0.0
    %725 = vmatpush1.msra.mxu0 %v675
    %726 = vmatprep.subr.mxu0 0.0
    %727 = vmatpush1.msra.mxu0 %v674
    %728 = vmatprep.subr.mxu0 0.0
    %729 = vmatpush2.msra.mxu0 0.0
    %730 = vmatprep.subr.mxu0 0.0
    %731 = vmatpush2.msra.mxu0 0.0
    %732 = vmatprep.subr.mxu0 0.0
    %733 = vmatpush2.msra.mxu0 0.0
    %734 = vmatprep.subr.mxu0 0.0
    %735 = vmatpush2.msra.mxu0 0.0
    %736 = vmatprep.subr.mxu0 0.0
    %737 = vmatpush2.msra.mxu0 0.0
    %738 = vmatprep.subr.mxu0 0.0
    %739 = vmatpush2.msra.mxu0 0.0
    %740 = vmatprep.subr.mxu0 0.0
    %741 = vmatpush2.msra.mxu0 0.0
    %742 = vmatprep.subr.mxu0 0.0
    %743 = vmatpush2.msra.mxu0 0.0
    %744 = vmatprep.subr.mxu0 0.0
    %745 = vmatpush2.msra.mxu0 0.0
    %746 = vmatprep.subr.mxu0 0.0
    %747 = vmatpush2.msra.mxu0 0.0
    %748 = vmatprep.subr.mxu0 0.0
    %749 = vmatpush2.msra.mxu0 0.0
    %750 = vmatprep.subr.mxu0 0.0
    %751 = vmatpush2.msra.mxu0 0.0
    %752 = vmatprep.subr.mxu0 0.0
    %753 = vmatpush2.msra.mxu0 0.0
    %754 = vmatprep.subr.mxu0 0.0
    %755 = vmatpush2.msra.mxu0 0.0
    %756 = vmatprep.subr.mxu0 0.0
    %757 = vmatpush2.msra.mxu0 0.0
    %758 = vmatprep.subr.mxu0 0.0
    %759 = vmatpush2.msra.mxu0 0.0
    %760 = vmatprep.mubr.f32.mxu0 0.0
    %761 = vmatmul.mubr.f32.gmra.mxu0 %v679
    %v762 = vpop.f32.mrf.mxu0
    %v763 = vadd.f32 0.0, %v762
    %v764 = vpop.f32.mrf.mxu0
    %765 = vmatprep.mubr.f32.mxu0 0.0
    %766 = vmatmul.mubr.f32.gmra.mxu0 %v682
    %v767 = vpop.f32.mrf.mxu0
    %v768 = vadd.f32 0.0, %v767
    %v769 = vpop.f32.mrf.mxu0
    %770 = vmatprep.mubr.f32.mxu0 0.0
    %771 = vmatmul.mubr.f32.gmra.mxu0 %v685
    %v772 = vpop.f32.mrf.mxu0
    %v773 = vadd.f32 0.0, %v772
    %v774 = vpop.f32.mrf.mxu0
    %775 = vmatprep.mubr.f32.mxu0 0.0
    %776 = vmatmul.mubr.f32.gmra.mxu0 %v688
    %v777 = vpop.f32.mrf.mxu0
    %v778 = vadd.f32 0.0, %v777
    %v779 = vpop.f32.mrf.mxu0
    %780 = vmatprep.mubr.f32.mxu0 0.0
    %781 = vmatmul.mubr.f32.gmra.mxu0 %v691
    %v782 = vpop.f32.mrf.mxu0
    %v783 = vadd.f32 0.0, %v782
    %v784 = vpop.f32.mrf.mxu0
    %785 = vmatprep.mubr.f32.mxu0 0.0
    %786 = vmatmul.mubr.f32.gmra.mxu0 %v694
    %v787 = vpop.f32.mrf.mxu0
    %v788 = vadd.f32 0.0, %v787
    %v789 = vpop.f32.mrf.mxu0
    %790 = vdwg.mxu0
    %v791 = vadd.f32 %v640, %v763
    %v792 = vadd.f32 %v645, %v768
    %v793 = vadd.f32 %v650, %v773
    %v794 = vadd.f32 %v655, %v778
    %v795 = vadd.f32 %v660, %v783
    %v796 = vadd.f32 %v665, %v788
    %v797 = vld [vmem:[#allocation2 + $0x3] sm:$0xff]
    %v798 = vld [vmem:[#allocation2 + $0xb] sm:$0xff]
    %v799 = vld [vmem:[#allocation2 + $0x13] sm:$0xff]
    %v800 = vld [vmem:[#allocation2 + $0x1b] sm:$0xff]
    %v801 = vld [vmem:[#allocation2 + $0x23] sm:$0xff]
    %v802 = vld [vmem:[#allocation2 + $0x2b] sm:$0xf]
    %v803 = vld [vmem:[#allocation6 + $0x198] sm:$0xff]
    %v804 = vld [vmem:[#allocation6 + $0x1a0] sm:$0xff]
    %v805 = vld [vmem:[#allocation6 + $0x1a8] sm:$0xff]
    %v806 = vld [vmem:[#allocation6 + $0x1b0] sm:$0xff]
    %v808 = vsel %vm413, %v797, 0
    %v811 = vsel %vm413, %v798, 0
    %v814 = vsel %vm413, %v799, 0
    %v817 = vsel %vm413, %v800, 0
    %v820 = vsel %vm413, %v801, 0
    %v823 = vsel %vm413, %v802, 0
    %825 = vmatprep.subr.mxu0 0.0
    %826 = vmatpush1.msra.mxu0 0.0
    %827 = vmatprep.subr.mxu0 0.0
    %828 = vmatpush1.msra.mxu0 0.0
    %829 = vmatprep.subr.mxu0 0.0
    %830 = vmatpush1.msra.mxu0 0.0
    %831 = vmatprep.subr.mxu0 0.0
    %832 = vmatpush1.msra.mxu0 0.0
    %833 = vmatprep.subr.mxu0 0.0
    %834 = vmatpush1.msra.mxu0 0.0
    %835 = vmatprep.subr.mxu0 0.0
    %836 = vmatpush1.msra.mxu0 0.0
    %837 = vmatprep.subr.mxu0 0.0
    %838 = vmatpush1.msra.mxu0 0.0
    %839 = vmatprep.subr.mxu0 0.0
    %840 = vmatpush1.msra.mxu0 0.0
    %841 = vmatprep.subr.mxu0 0.0
    %842 = vmatpush1.msra.mxu0 0.0
    %843 = vmatprep.subr.mxu0 0.0
    %844 = vmatpush1.msra.mxu0 0.0
    %845 = vmatprep.subr.mxu0 0.0
    %846 = vmatpush1.msra.mxu0 0.0
    %847 = vmatprep.subr.mxu0 0.0
    %848 = vmatpush1.msra.mxu0 0.0
    %849 = vmatprep.subr.mxu0 0.0
    %850 = vmatpush1.msra.mxu0 %v806
    %851 = vmatprep.subr.mxu0 0.0
    %852 = vmatpush1.msra.mxu0 %v805
    %853 = vmatprep.subr.mxu0 0.0
    %854 = vmatpush1.msra.mxu0 %v804
    %855 = vmatprep.subr.mxu0 0.0
    %856 = vmatpush1.msra.mxu0 %v803
    %857 = vmatprep.subr.mxu0 0.0
    %858 = vmatpush2.msra.mxu0 0.0
    %859 = vmatprep.subr.mxu0 0.0
    %860 = vmatpush2.msra.mxu0 0.0
    %861 = vmatprep.subr.mxu0 0.0
    %862 = vmatpush2.msra.mxu0 0.0
    %863 = vmatprep.subr.mxu0 0.0
    %864 = vmatpush2.msra.mxu0 0.0
    %865 = vmatprep.subr.mxu0 0.0
    %866 = vmatpush2.msra.mxu0 0.0
    %867 = vmatprep.subr.mxu0 0.0
    %868 = vmatpush2.msra.mxu0 0.0
    %869 = vmatprep.subr.mxu0 0.0
    %870 = vmatpush2.msra.mxu0 0.0
    %871 = vmatprep.subr.mxu0 0.0
    %872 = vmatpush2.msra.mxu0 0.0
    %873 = vmatprep.subr.mxu0 0.0
    %874 = vmatpush2.msra.mxu0 0.0
    %875 = vmatprep.subr.mxu0 0.0
    %876 = vmatpush2.msra.mxu0 0.0
    %877 = vmatprep.subr.mxu0 0.0
    %878 = vmatpush2.msra.mxu0 0.0
    %879 = vmatprep.subr.mxu0 0.0
    %880 = vmatpush2.msra.mxu0 0.0
    %881 = vmatprep.subr.mxu0 0.0
    %882 = vmatpush2.msra.mxu0 0.0
    %883 = vmatprep.subr.mxu0 0.0
    %884 = vmatpush2.msra.mxu0 0.0
    %885 = vmatprep.subr.mxu0 0.0
    %886 = vmatpush2.msra.mxu0 0.0
    %887 = vmatprep.subr.mxu0 0.0
    %888 = vmatpush2.msra.mxu0 0.0
    %889 = vmatprep.mubr.f32.mxu0 0.0
    %890 = vmatmul.mubr.f32.gmra.mxu0 %v808
    %v891 = vpop.f32.mrf.mxu0
    %v892 = vadd.f32 0.0, %v891
    %v893 = vpop.f32.mrf.mxu0
    %894 = vmatprep.mubr.f32.mxu0 0.0
    %895 = vmatmul.mubr.f32.gmra.mxu0 %v811
    %v896 = vpop.f32.mrf.mxu0
    %v897 = vadd.f32 0.0, %v896
    %v898 = vpop.f32.mrf.mxu0
    %899 = vmatprep.mubr.f32.mxu0 0.0
    %900 = vmatmul.mubr.f32.gmra.mxu0 %v814
    %v901 = vpop.f32.mrf.mxu0
    %v902 = vadd.f32 0.0, %v901
    %v903 = vpop.f32.mrf.mxu0
    %904 = vmatprep.mubr.f32.mxu0 0.0
    %905 = vmatmul.mubr.f32.gmra.mxu0 %v817
    %v906 = vpop.f32.mrf.mxu0
    %v907 = vadd.f32 0.0, %v906
    %v908 = vpop.f32.mrf.mxu0
    %909 = vmatprep.mubr.f32.mxu0 0.0
    %910 = vmatmul.mubr.f32.gmra.mxu0 %v820
    %v911 = vpop.f32.mrf.mxu0
    %v912 = vadd.f32 0.0, %v911
    %v913 = vpop.f32.mrf.mxu0
    %914 = vmatprep.mubr.f32.mxu0 0.0
    %915 = vmatmul.mubr.f32.gmra.mxu0 %v823
    %v916 = vpop.f32.mrf.mxu0
    %v917 = vadd.f32 0.0, %v916
    %v918 = vpop.f32.mrf.mxu0
    %919 = vdwg.mxu0
    %v920 = vadd.f32 %v791, %v892
    %v921 = vadd.f32 %v792, %v897
    %v922 = vadd.f32 %v793, %v902
    %v923 = vadd.f32 %v794, %v907
    %v924 = vadd.f32 %v795, %v912
    %v925 = vadd.f32 %v796, %v917
    %v926 = vld [vmem:[#allocation2 + $0x4] sm:$0xff]
    %v927 = vld [vmem:[#allocation2 + $0xc] sm:$0xff]
    %v928 = vld [vmem:[#allocation2 + $0x14] sm:$0xff]
    %v929 = vld [vmem:[#allocation2 + $0x1c] sm:$0xff]
    %v930 = vld [vmem:[#allocation2 + $0x24] sm:$0xff]
    %v931 = vld [vmem:[#allocation2 + $0x2c] sm:$0xf]
    %v932 = vld [vmem:[#allocation6 + $0x1b8] sm:$0xff]
    %v933 = vld [vmem:[#allocation6 + $0x1c0] sm:$0xff]
    %v934 = vld [vmem:[#allocation6 + $0x1c8] sm:$0xff]
    %v935 = vld [vmem:[#allocation6 + $0x1d0] sm:$0xff]
    %v937 = vsel %vm413, %v926, 0
    %v940 = vsel %vm413, %v927, 0
    %v943 = vsel %vm413, %v928, 0
    %v946 = vsel %vm413, %v929, 0
    %v949 = vsel %vm413, %v930, 0
    %v952 = vsel %vm413, %v931, 0
    %954 = vmatprep.subr.mxu0 0.0
    %955 = vmatpush1.msra.mxu0 0.0
    %956 = vmatprep.subr.mxu0 0.0
    %957 = vmatpush1.msra.mxu0 0.0
    %958 = vmatprep.subr.mxu0 0.0
    %959 = vmatpush1.msra.mxu0 0.0
    %960 = vmatprep.subr.mxu0 0.0
    %961 = vmatpush1.msra.mxu0 0.0
    %962 = vmatprep.subr.mxu0 0.0
    %963 = vmatpush1.msra.mxu0 0.0
    %964 = vmatprep.subr.mxu0 0.0
    %965 = vmatpush1.msra.mxu0 0.0
    %966 = vmatprep.subr.mxu0 0.0
    %967 = vmatpush1.msra.mxu0 0.0
    %968 = vmatprep.subr.mxu0 0.0
    %969 = vmatpush1.msra.mxu0 0.0
    %970 = vmatprep.subr.mxu0 0.0
    %971 = vmatpush1.msra.mxu0 0.0
    %972 = vmatprep.subr.mxu0 0.0
    %973 = vmatpush1.msra.mxu0 0.0
    %974 = vmatprep.subr.mxu0 0.0
    %975 = vmatpush1.msra.mxu0 0.0
    %976 = vmatprep.subr.mxu0 0.0
    %977 = vmatpush1.msra.mxu0 0.0
    %978 = vmatprep.subr.mxu0 0.0
    %979 = vmatpush1.msra.mxu0 %v935
    %980 = vmatprep.subr.mxu0 0.0
    %981 = vmatpush1.msra.mxu0 %v934
    %982 = vmatprep.subr.mxu0 0.0
    %983 = vmatpush1.msra.mxu0 %v933
    %984 = vmatprep.subr.mxu0 0.0
    %985 = vmatpush1.msra.mxu0 %v932
    %986 = vmatprep.subr.mxu0 0.0
    %987 = vmatpush2.msra.mxu0 0.0
    %988 = vmatprep.subr.mxu0 0.0
    %989 = vmatpush2.msra.mxu0 0.0
    %990 = vmatprep.subr.mxu0 0.0
    %991 = vmatpush2.msra.mxu0 0.0
    %992 = vmatprep.subr.mxu0 0.0
    %993 = vmatpush2.msra.mxu0 0.0
    %994 = vmatprep.subr.mxu0 0.0
    %995 = vmatpush2.msra.mxu0 0.0
    %996 = vmatprep.subr.mxu0 0.0
    %997 = vmatpush2.msra.mxu0 0.0
    %998 = vmatprep.subr.mxu0 0.0
    %999 = vmatpush2.msra.mxu0 0.0
    %1000 = vmatprep.subr.mxu0 0.0
    %1001 = vmatpush2.msra.mxu0 0.0
    %1002 = vmatprep.subr.mxu0 0.0
    %1003 = vmatpush2.msra.mxu0 0.0
    %1004 = vmatprep.subr.mxu0 0.0
    %1005 = vmatpush2.msra.mxu0 0.0
    %1006 = vmatprep.subr.mxu0 0.0
    %1007 = vmatpush2.msra.mxu0 0.0
    %1008 = vmatprep.subr.mxu0 0.0
    %1009 = vmatpush2.msra.mxu0 0.0
    %1010 = vmatprep.subr.mxu0 0.0
    %1011 = vmatpush2.msra.mxu0 0.0
    %1012 = vmatprep.subr.mxu0 0.0
    %1013 = vmatpush2.msra.mxu0 0.0
    %1014 = vmatprep.subr.mxu0 0.0
    %1015 = vmatpush2.msra.mxu0 0.0
    %1016 = vmatprep.subr.mxu0 0.0
    %1017 = vmatpush2.msra.mxu0 0.0
    %1018 = vmatprep.mubr.f32.mxu0 0.0
    %1019 = vmatmul.mubr.f32.gmra.mxu0 %v937
    %v1020 = vpop.f32.mrf.mxu0
    %v1021 = vadd.f32 0.0, %v1020
    %v1022 = vpop.f32.mrf.mxu0
    %1023 = vmatprep.mubr.f32.mxu0 0.0
    %1024 = vmatmul.mubr.f32.gmra.mxu0 %v940
    %v1025 = vpop.f32.mrf.mxu0
    %v1026 = vadd.f32 0.0, %v1025
    %v1027 = vpop.f32.mrf.mxu0
    %1028 = vmatprep.mubr.f32.mxu0 0.0
    %1029 = vmatmul.mubr.f32.gmra.mxu0 %v943
    %v1030 = vpop.f32.mrf.mxu0
    %v1031 = vadd.f32 0.0, %v1030
    %v1032 = vpop.f32.mrf.mxu0
    %1033 = vmatprep.mubr.f32.mxu0 0.0
    %1034 = vmatmul.mubr.f32.gmra.mxu0 %v946
    %v1035 = vpop.f32.mrf.mxu0
    %v1036 = vadd.f32 0.0, %v1035
    %v1037 = vpop.f32.mrf.mxu0
    %1038 = vmatprep.mubr.f32.mxu0 0.0
    %1039 = vmatmul.mubr.f32.gmra.mxu0 %v949
    %v1040 = vpop.f32.mrf.mxu0
    %v1041 = vadd.f32 0.0, %v1040
    %v1042 = vpop.f32.mrf.mxu0
    %1043 = vmatprep.mubr.f32.mxu0 0.0
    %1044 = vmatmul.mubr.f32.gmra.mxu0 %v952
    %v1045 = vpop.f32.mrf.mxu0
    %v1046 = vadd.f32 0.0, %v1045
    %v1047 = vpop.f32.mrf.mxu0
    %1048 = vdwg.mxu0
    %v1049 = vadd.f32 %v920, %v1021
    %v1050 = vadd.f32 %v921, %v1026
    %v1051 = vadd.f32 %v922, %v1031
    %v1052 = vadd.f32 %v923, %v1036
    %v1053 = vadd.f32 %v924, %v1041
    %v1054 = vadd.f32 %v925, %v1046
    %v1055 = vld [vmem:[#allocation6 + $0x1d8] sm:$0x1]
    %v1056 = vlaneseq
    %v1057 = vshrl.u32 %v1056, 7
    %v1058 = vsub.s32 0, %v1057
    %v1059 = vrot.slane %v1055, %v1058
    %v1060 = vadd.f32 %v1049, %v1059
    %v1061 = vadd.f32 %v1050, %v1059
    %v1062 = vadd.f32 %v1051, %v1059
    %v1063 = vadd.f32 %v1052, %v1059
    %v1064 = vadd.f32 %v1053, %v1059
    %v1065 = vadd.f32 %v1054, %v1059
    %v1066 = vmax.f32 %v1060, 0.0
    %v1067 = vmax.f32 %v1061, 0.0
    %v1068 = vmax.f32 %v1062, 0.0
    %v1069 = vmax.f32 %v1063, 0.0
    %v1070 = vmax.f32 %v1064, 0.0
    %v1071 = vmax.f32 %v1065, 0.0
    %v1072 = vld [vmem:[#allocation6 + $0x1e0] sm:$0xff]
    %v1073 = vld [vmem:[#allocation6 + $0x1e8] sm:$0xff]
    %v1074 = vld [vmem:[#allocation6 + $0x1f0] sm:$0xff]
    %v1075 = vld [vmem:[#allocation6 + $0x1f8] sm:$0xff]
    %vm1082 = vcmask 1046528
    %v1083 = vrot.slane %v1066, 1
    %v1084 = vrot.slane %v1067, 1
    %v1085 = vsel %vm1082, %v1083, %v1084
    %v1086 = vrot.slane %v1068, 1
    %v1087 = vsel %vm1082, %v1084, %v1086
    %v1088 = vrot.slane %v1069, 1
    %v1089 = vsel %vm1082, %v1086, %v1088
    %v1090 = vrot.slane %v1070, 1
    %v1091 = vsel %vm1082, %v1088, %v1090
    %v1092 = vrot.slane %v1071, 1
    %v1093 = vsel %vm1082, %v1090, %v1092
    %vm1094 = vcmask 130048
    %v1095 = vsel %vm1094, %v1085, 0
    %v1097 = vsel %vm1094, %v1087, 0
    %v1099 = vsel %vm1094, %v1089, 0
    %v1101 = vsel %vm1094, %v1091, 0
    %v1103 = vsel %vm1094, %v1093, 0
    %1105 = vmatprep.subr.mxu0 0.0
    %1106 = vmatpush1.msra.mxu0 0.0
    %1107 = vmatprep.subr.mxu0 0.0
    %1108 = vmatpush1.msra.mxu0 0.0
    %1109 = vmatprep.subr.mxu0 0.0
    %1110 = vmatpush1.msra.mxu0 0.0
    %1111 = vmatprep.subr.mxu0 0.0
    %1112 = vmatpush1.msra.mxu0 0.0
    %1113 = vmatprep.subr.mxu0 0.0
    %1114 = vmatpush1.msra.mxu0 0.0
    %1115 = vmatprep.subr.mxu0 0.0
    %1116 = vmatpush1.msra.mxu0 0.0
    %1117 = vmatprep.subr.mxu0 0.0
    %1118 = vmatpush1.msra.mxu0 0.0
    %1119 = vmatprep.subr.mxu0 0.0
    %1120 = vmatpush1.msra.mxu0 0.0
    %1121 = vmatprep.subr.mxu0 0.0
    %1122 = vmatpush1.msra.mxu0 0.0
    %1123 = vmatprep.subr.mxu0 0.0
    %1124 = vmatpush1.msra.mxu0 0.0
    %1125 = vmatprep.subr.mxu0 0.0
    %1126 = vmatpush1.msra.mxu0 0.0
    %1127 = vmatprep.subr.mxu0 0.0
    %1128 = vmatpush1.msra.mxu0 0.0
    %1129 = vmatprep.subr.mxu0 0.0
    %1130 = vmatpush1.msra.mxu0 0.0
    %1131 = vmatprep.subr.mxu0 0.0
    %1132 = vmatpush1.msra.mxu0 0.0
    %1133 = vmatprep.subr.mxu0 0.0
    %1134 = vmatpush1.msra.mxu0 %v1075
    %1135 = vmatprep.subr.mxu0 0.0
    %1136 = vmatpush1.msra.mxu0 %v1074
    %1137 = vmatprep.subr.mxu0 0.0
    %1138 = vmatpush2.msra.mxu0 0.0
    %1139 = vmatprep.subr.mxu0 0.0
    %1140 = vmatpush2.msra.mxu0 0.0
    %1141 = vmatprep.subr.mxu0 0.0
    %1142 = vmatpush2.msra.mxu0 0.0
    %1143 = vmatprep.subr.mxu0 0.0
    %1144 = vmatpush2.msra.mxu0 0.0
    %1145 = vmatprep.subr.mxu0 0.0
    %1146 = vmatpush2.msra.mxu0 0.0
    %1147 = vmatprep.subr.mxu0 0.0
    %1148 = vmatpush2.msra.mxu0 0.0
    %1149 = vmatprep.subr.mxu0 0.0
    %1150 = vmatpush2.msra.mxu0 0.0
    %1151 = vmatprep.subr.mxu0 0.0
    %1152 = vmatpush2.msra.mxu0 0.0
    %1153 = vmatprep.subr.mxu0 0.0
    %1154 = vmatpush2.msra.mxu0 0.0
    %1155 = vmatprep.subr.mxu0 0.0
    %1156 = vmatpush2.msra.mxu0 0.0
    %1157 = vmatprep.subr.mxu0 0.0
    %1158 = vmatpush2.msra.mxu0 0.0
    %1159 = vmatprep.subr.mxu0 0.0
    %1160 = vmatpush2.msra.mxu0 0.0
    %1161 = vmatprep.subr.mxu0 0.0
    %1162 = vmatpush2.msra.mxu0 0.0
    %1163 = vmatprep.subr.mxu0 0.0
    %1164 = vmatpush2.msra.mxu0 0.0
    %1165 = vmatprep.subr.mxu0 0.0
    %1166 = vmatpush2.msra.mxu0 0.0
    %1167 = vmatprep.subr.mxu0 0.0
    %1168 = vmatpush2.msra.mxu0 0.0
    %1169 = vmatprep.mubr.f32.mxu0 0.0
    %1170 = vmatmul.mubr.f32.gmra.mxu0 %v1095
    %v1171 = vpop.f32.mrf.mxu0
    %v1172 = vadd.f32 0.0, %v1171
    %v1173 = vpop.f32.mrf.mxu0
    %1174 = vmatprep.mubr.f32.mxu0 0.0
    %1175 = vmatmul.mubr.f32.gmra.mxu0 %v1097
    %v1176 = vpop.f32.mrf.mxu0
    %v1177 = vadd.f32 0.0, %v1176
    %v1178 = vpop.f32.mrf.mxu0
    %1179 = vmatprep.mubr.f32.mxu0 0.0
    %1180 = vmatmul.mubr.f32.gmra.mxu0 %v1099
    %v1181 = vpop.f32.mrf.mxu0
    %v1182 = vadd.f32 0.0, %v1181
    %v1183 = vpop.f32.mrf.mxu0
    %1184 = vmatprep.mubr.f32.mxu0 0.0
    %1185 = vmatmul.mubr.f32.gmra.mxu0 %v1101
    %v1186 = vpop.f32.mrf.mxu0
    %v1187 = vadd.f32 0.0, %v1186
    %v1188 = vpop.f32.mrf.mxu0
    %1189 = vmatprep.mubr.f32.mxu0 0.0
    %1190 = vmatmul.mubr.f32.gmra.mxu0 %v1103
    %v1191 = vpop.f32.mrf.mxu0
    %v1192 = vadd.f32 0.0, %v1191
    %v1193 = vpop.f32.mrf.mxu0
    %1194 = vdwg.mxu0
    %v1195 = vsel %vm1094, %v1066, 0
    %v1197 = vsel %vm1094, %v1067, 0
    %v1199 = vsel %vm1094, %v1068, 0
    %v1201 = vsel %vm1094, %v1069, 0
    %v1203 = vsel %vm1094, %v1070, 0
    %1205 = vmatprep.subr.mxu0 0.0
    %1206 = vmatpush1.msra.mxu0 0.0
    %1207 = vmatprep.subr.mxu0 0.0
    %1208 = vmatpush1.msra.mxu0 0.0
    %1209 = vmatprep.subr.mxu0 0.0
    %1210 = vmatpush1.msra.mxu0 0.0
    %1211 = vmatprep.subr.mxu0 0.0
    %1212 = vmatpush1.msra.mxu0 0.0
    %1213 = vmatprep.subr.mxu0 0.0
    %1214 = vmatpush1.msra.mxu0 0.0
    %1215 = vmatprep.subr.mxu0 0.0
    %1216 = vmatpush1.msra.mxu0 0.0
    %1217 = vmatprep.subr.mxu0 0.0
    %1218 = vmatpush1.msra.mxu0 0.0
    %1219 = vmatprep.subr.mxu0 0.0
    %1220 = vmatpush1.msra.mxu0 0.0
    %1221 = vmatprep.subr.mxu0 0.0
    %1222 = vmatpush1.msra.mxu0 0.0
    %1223 = vmatprep.subr.mxu0 0.0
    %1224 = vmatpush1.msra.mxu0 0.0
    %1225 = vmatprep.subr.mxu0 0.0
    %1226 = vmatpush1.msra.mxu0 0.0
    %1227 = vmatprep.subr.mxu0 0.0
    %1228 = vmatpush1.msra.mxu0 0.0
    %1229 = vmatprep.subr.mxu0 0.0
    %1230 = vmatpush1.msra.mxu0 0.0
    %1231 = vmatprep.subr.mxu0 0.0
    %1232 = vmatpush1.msra.mxu0 0.0
    %1233 = vmatprep.subr.mxu0 0.0
    %1234 = vmatpush1.msra.mxu0 %v1073
    %1235 = vmatprep.subr.mxu0 0.0
    %1236 = vmatpush1.msra.mxu0 %v1072
    %1237 = vmatprep.subr.mxu0 0.0
    %1238 = vmatpush2.msra.mxu0 0.0
    %1239 = vmatprep.subr.mxu0 0.0
    %1240 = vmatpush2.msra.mxu0 0.0
    %1241 = vmatprep.subr.mxu0 0.0
    %1242 = vmatpush2.msra.mxu0 0.0
    %1243 = vmatprep.subr.mxu0 0.0
    %1244 = vmatpush2.msra.mxu0 0.0
    %1245 = vmatprep.subr.mxu0 0.0
    %1246 = vmatpush2.msra.mxu0 0.0
    %1247 = vmatprep.subr.mxu0 0.0
    %1248 = vmatpush2.msra.mxu0 0.0
    %1249 = vmatprep.subr.mxu0 0.0
    %1250 = vmatpush2.msra.mxu0 0.0
    %1251 = vmatprep.subr.mxu0 0.0
    %1252 = vmatpush2.msra.mxu0 0.0
    %1253 = vmatprep.subr.mxu0 0.0
    %1254 = vmatpush2.msra.mxu0 0.0
    %1255 = vmatprep.subr.mxu0 0.0
    %1256 = vmatpush2.msra.mxu0 0.0
    %1257 = vmatprep.subr.mxu0 0.0
    %1258 = vmatpush2.msra.mxu0 0.0
    %1259 = vmatprep.subr.mxu0 0.0
    %1260 = vmatpush2.msra.mxu0 0.0
    %1261 = vmatprep.subr.mxu0 0.0
    %1262 = vmatpush2.msra.mxu0 0.0
    %1263 = vmatprep.subr.mxu0 0.0
    %1264 = vmatpush2.msra.mxu0 0.0
    %1265 = vmatprep.subr.mxu0 0.0
    %1266 = vmatpush2.msra.mxu0 0.0
    %1267 = vmatprep.subr.mxu0 0.0
    %1268 = vmatpush2.msra.mxu0 0.0
    %1269 = vmatprep.mubr.f32.mxu0 0.0
    %1270 = vmatmul.mubr.f32.gmra.mxu0 %v1195
    %v1271 = vpop.f32.mrf.mxu0
    %v1272 = vadd.f32 %v1172, %v1271
    %v1273 = vpop.f32.mrf.mxu0
    %1274 = vmatprep.mubr.f32.mxu0 0.0
    %1275 = vmatmul.mubr.f32.gmra.mxu0 %v1197
    %v1276 = vpop.f32.mrf.mxu0
    %v1277 = vadd.f32 %v1177, %v1276
    %v1278 = vpop.f32.mrf.mxu0
    %1279 = vmatprep.mubr.f32.mxu0 0.0
    %1280 = vmatmul.mubr.f32.gmra.mxu0 %v1199
    %v1281 = vpop.f32.mrf.mxu0
    %v1282 = vadd.f32 %v1182, %v1281
    %v1283 = vpop.f32.mrf.mxu0
    %1284 = vmatprep.mubr.f32.mxu0 0.0
    %1285 = vmatmul.mubr.f32.gmra.mxu0 %v1201
    %v1286 = vpop.f32.mrf.mxu0
    %v1287 = vadd.f32 %v1187, %v1286
    %v1288 = vpop.f32.mrf.mxu0
    %1289 = vmatprep.mubr.f32.mxu0 0.0
    %1290 = vmatmul.mubr.f32.gmra.mxu0 %v1203
    %v1291 = vpop.f32.mrf.mxu0
    %v1292 = vadd.f32 %v1192, %v1291
    %v1293 = vpop.f32.mrf.mxu0
    %1294 = vdwg.mxu0
    %v1295 = vld [vmem:[#allocation6 + $0x200] sm:$0xff]
    %v1296 = vld [vmem:[#allocation6 + $0x208] sm:$0xff]
    %vm1297 = vcmask 1045504
    %v1298 = vrot.slane %v1066, 2
    %v1299 = vrot.slane %v1067, 2
    %v1300 = vsel %vm1297, %v1298, %v1299
    %v1301 = vrot.slane %v1068, 2
    %v1302 = vsel %vm1297, %v1299, %v1301
    %v1303 = vrot.slane %v1069, 2
    %v1304 = vsel %vm1297, %v1301, %v1303
    %v1305 = vrot.slane %v1070, 2
    %v1306 = vsel %vm1297, %v1303, %v1305
    %v1307 = vrot.slane %v1071, 2
    %v1308 = vsel %vm1297, %v1305, %v1307
    %v1309 = vsel %vm1094, %v1300, 0
    %v1311 = vsel %vm1094, %v1302, 0
    %v1313 = vsel %vm1094, %v1304, 0
    %v1315 = vsel %vm1094, %v1306, 0
    %v1317 = vsel %vm1094, %v1308, 0
    %1319 = vmatprep.subr.mxu0 0.0
    %1320 = vmatpush1.msra.mxu0 0.0
    %1321 = vmatprep.subr.mxu0 0.0
    %1322 = vmatpush1.msra.mxu0 0.0
    %1323 = vmatprep.subr.mxu0 0.0
    %1324 = vmatpush1.msra.mxu0 0.0
    %1325 = vmatprep.subr.mxu0 0.0
    %1326 = vmatpush1.msra.mxu0 0.0
    %1327 = vmatprep.subr.mxu0 0.0
    %1328 = vmatpush1.msra.mxu0 0.0
    %1329 = vmatprep.subr.mxu0 0.0
    %1330 = vmatpush1.msra.mxu0 0.0
    %1331 = vmatprep.subr.mxu0 0.0
    %1332 = vmatpush1.msra.mxu0 0.0
    %1333 = vmatprep.subr.mxu0 0.0
    %1334 = vmatpush1.msra.mxu0 0.0
    %1335 = vmatprep.subr.mxu0 0.0
    %1336 = vmatpush1.msra.mxu0 0.0
    %1337 = vmatprep.subr.mxu0 0.0
    %1338 = vmatpush1.msra.mxu0 0.0
    %1339 = vmatprep.subr.mxu0 0.0
    %1340 = vmatpush1.msra.mxu0 0.0
    %1341 = vmatprep.subr.mxu0 0.0
    %1342 = vmatpush1.msra.mxu0 0.0
    %1343 = vmatprep.subr.mxu0 0.0
    %1344 = vmatpush1.msra.mxu0 0.0
    %1345 = vmatprep.subr.mxu0 0.0
    %1346 = vmatpush1.msra.mxu0 0.0
    %1347 = vmatprep.subr.mxu0 0.0
    %1348 = vmatpush1.msra.mxu0 %v1296
    %1349 = vmatprep.subr.mxu0 0.0
    %1350 = vmatpush1.msra.mxu0 %v1295
    %1351 = vmatprep.subr.mxu0 0.0
    %1352 = vmatpush2.msra.mxu0 0.0
    %1353 = vmatprep.subr.mxu0 0.0
    %1354 = vmatpush2.msra.mxu0 0.0
    %1355 = vmatprep.subr.mxu0 0.0
    %1356 = vmatpush2.msra.mxu0 0.0
    %1357 = vmatprep.subr.mxu0 0.0
    %1358 = vmatpush2.msra.mxu0 0.0
    %1359 = vmatprep.subr.mxu0 0.0
    %1360 = vmatpush2.msra.mxu0 0.0
    %1361 = vmatprep.subr.mxu0 0.0
    %1362 = vmatpush2.msra.mxu0 0.0
    %1363 = vmatprep.subr.mxu0 0.0
    %1364 = vmatpush2.msra.mxu0 0.0
    %1365 = vmatprep.subr.mxu0 0.0
    %1366 = vmatpush2.msra.mxu0 0.0
    %1367 = vmatprep.subr.mxu0 0.0
    %1368 = vmatpush2.msra.mxu0 0.0
    %1369 = vmatprep.subr.mxu0 0.0
    %1370 = vmatpush2.msra.mxu0 0.0
    %1371 = vmatprep.subr.mxu0 0.0
    %1372 = vmatpush2.msra.mxu0 0.0
    %1373 = vmatprep.subr.mxu0 0.0
    %1374 = vmatpush2.msra.mxu0 0.0
    %1375 = vmatprep.subr.mxu0 0.0
    %1376 = vmatpush2.msra.mxu0 0.0
    %1377 = vmatprep.subr.mxu0 0.0
    %1378 = vmatpush2.msra.mxu0 0.0
    %1379 = vmatprep.subr.mxu0 0.0
    %1380 = vmatpush2.msra.mxu0 0.0
    %1381 = vmatprep.subr.mxu0 0.0
    %1382 = vmatpush2.msra.mxu0 0.0
    %1383 = vmatprep.mubr.f32.mxu0 0.0
    %1384 = vmatmul.mubr.f32.gmra.mxu0 %v1309
    %v1385 = vpop.f32.mrf.mxu0
    %v1386 = vadd.f32 0.0, %v1385
    %v1387 = vpop.f32.mrf.mxu0
    %1388 = vmatprep.mubr.f32.mxu0 0.0
    %1389 = vmatmul.mubr.f32.gmra.mxu0 %v1311
    %v1390 = vpop.f32.mrf.mxu0
    %v1391 = vadd.f32 0.0, %v1390
    %v1392 = vpop.f32.mrf.mxu0
    %1393 = vmatprep.mubr.f32.mxu0 0.0
    %1394 = vmatmul.mubr.f32.gmra.mxu0 %v1313
    %v1395 = vpop.f32.mrf.mxu0
    %v1396 = vadd.f32 0.0, %v1395
    %v1397 = vpop.f32.mrf.mxu0
    %1398 = vmatprep.mubr.f32.mxu0 0.0
    %1399 = vmatmul.mubr.f32.gmra.mxu0 %v1315
    %v1400 = vpop.f32.mrf.mxu0
    %v1401 = vadd.f32 0.0, %v1400
    %v1402 = vpop.f32.mrf.mxu0
    %1403 = vmatprep.mubr.f32.mxu0 0.0
    %1404 = vmatmul.mubr.f32.gmra.mxu0 %v1317
    %v1405 = vpop.f32.mrf.mxu0
    %v1406 = vadd.f32 0.0, %v1405
    %v1407 = vpop.f32.mrf.mxu0
    %1408 = vdwg.mxu0
    %v1409 = vadd.f32 %v1272, %v1386
    %v1410 = vadd.f32 %v1277, %v1391
    %v1411 = vadd.f32 %v1282, %v1396
    %v1412 = vadd.f32 %v1287, %v1401
    %v1413 = vadd.f32 %v1292, %v1406
    %v1414 = vld [vmem:[#allocation6 + $0x210] sm:$0xff]
    %v1415 = vld [vmem:[#allocation6 + $0x218] sm:$0xff]
    %vm1416 = vcmask 1044480
    %v1417 = vrot.slane %v1066, 3
    %v1418 = vrot.slane %v1067, 3
    %v1419 = vsel %vm1416, %v1417, %v1418
    %v1420 = vrot.slane %v1068, 3
    %v1421 = vsel %vm1416, %v1418, %v1420
    %v1422 = vrot.slane %v1069, 3
    %v1423 = vsel %vm1416, %v1420, %v1422
    %v1424 = vrot.slane %v1070, 3
    %v1425 = vsel %vm1416, %v1422, %v1424
    %v1426 = vrot.slane %v1071, 3
    %v1427 = vsel %vm1416, %v1424, %v1426
    %v1428 = vsel %vm1094, %v1419, 0
    %v1430 = vsel %vm1094, %v1421, 0
    %v1432 = vsel %vm1094, %v1423, 0
    %v1434 = vsel %vm1094, %v1425, 0
    %v1436 = vsel %vm1094, %v1427, 0
    %1438 = vmatprep.subr.mxu0 0.0
    %1439 = vmatpush1.msra.mxu0 0.0
    %1440 = vmatprep.subr.mxu0 0.0
    %1441 = vmatpush1.msra.mxu0 0.0
    %1442 = vmatprep.subr.mxu0 0.0
    %1443 = vmatpush1.msra.mxu0 0.0
    %1444 = vmatprep.subr.mxu0 0.0
    %1445 = vmatpush1.msra.mxu0 0.0
    %1446 = vmatprep.subr.mxu0 0.0
    %1447 = vmatpush1.msra.mxu0 0.0
    %1448 = vmatprep.subr.mxu0 0.0
    %1449 = vmatpush1.msra.mxu0 0.0
    %1450 = vmatprep.subr.mxu0 0.0
    %1451 = vmatpush1.msra.mxu0 0.0
    %1452 = vmatprep.subr.mxu0 0.0
    %1453 = vmatpush1.msra.mxu0 0.0
    %1454 = vmatprep.subr.mxu0 0.0
    %1455 = vmatpush1.msra.mxu0 0.0
    %1456 = vmatprep.subr.mxu0 0.0
    %1457 = vmatpush1.msra.mxu0 0.0
    %1458 = vmatprep.subr.mxu0 0.0
    %1459 = vmatpush1.msra.mxu0 0.0
    %1460 = vmatprep.subr.mxu0 0.0
    %1461 = vmatpush1.msra.mxu0 0.0
    %1462 = vmatprep.subr.mxu0 0.0
    %1463 = vmatpush1.msra.mxu0 0.0
    %1464 = vmatprep.subr.mxu0 0.0
    %1465 = vmatpush1.msra.mxu0 0.0
    %1466 = vmatprep.subr.mxu0 0.0
    %1467 = vmatpush1.msra.mxu0 %v1415
    %1468 = vmatprep.subr.mxu0 0.0
    %1469 = vmatpush1.msra.mxu0 %v1414
    %1470 = vmatprep.subr.mxu0 0.0
    %1471 = vmatpush2.msra.mxu0 0.0
    %1472 = vmatprep.subr.mxu0 0.0
    %1473 = vmatpush2.msra.mxu0 0.0
    %1474 = vmatprep.subr.mxu0 0.0
    %1475 = vmatpush2.msra.mxu0 0.0
    %1476 = vmatprep.subr.mxu0 0.0
    %1477 = vmatpush2.msra.mxu0 0.0
    %1478 = vmatprep.subr.mxu0 0.0
    %1479 = vmatpush2.msra.mxu0 0.0
    %1480 = vmatprep.subr.mxu0 0.0
    %1481 = vmatpush2.msra.mxu0 0.0
    %1482 = vmatprep.subr.mxu0 0.0
    %1483 = vmatpush2.msra.mxu0 0.0
    %1484 = vmatprep.subr.mxu0 0.0
    %1485 = vmatpush2.msra.mxu0 0.0
    %1486 = vmatprep.subr.mxu0 0.0
    %1487 = vmatpush2.msra.mxu0 0.0
    %1488 = vmatprep.subr.mxu0 0.0
    %1489 = vmatpush2.msra.mxu0 0.0
    %1490 = vmatprep.subr.mxu0 0.0
    %1491 = vmatpush2.msra.mxu0 0.0
    %1492 = vmatprep.subr.mxu0 0.0
    %1493 = vmatpush2.msra.mxu0 0.0
    %1494 = vmatprep.subr.mxu0 0.0
    %1495 = vmatpush2.msra.mxu0 0.0
    %1496 = vmatprep.subr.mxu0 0.0
    %1497 = vmatpush2.msra.mxu0 0.0
    %1498 = vmatprep.subr.mxu0 0.0
    %1499 = vmatpush2.msra.mxu0 0.0
    %1500 = vmatprep.subr.mxu0 0.0
    %1501 = vmatpush2.msra.mxu0 0.0
    %1502 = vmatprep.mubr.f32.mxu0 0.0
    %1503 = vmatmul.mubr.f32.gmra.mxu0 %v1428
    %v1504 = vpop.f32.mrf.mxu0
    %v1505 = vadd.f32 0.0, %v1504
    %v1506 = vpop.f32.mrf.mxu0
    %1507 = vmatprep.mubr.f32.mxu0 0.0
    %1508 = vmatmul.mubr.f32.gmra.mxu0 %v1430
    %v1509 = vpop.f32.mrf.mxu0
    %v1510 = vadd.f32 0.0, %v1509
    %v1511 = vpop.f32.mrf.mxu0
    %1512 = vmatprep.mubr.f32.mxu0 0.0
    %1513 = vmatmul.mubr.f32.gmra.mxu0 %v1432
    %v1514 = vpop.f32.mrf.mxu0
    %v1515 = vadd.f32 0.0, %v1514
    %v1516 = vpop.f32.mrf.mxu0
    %1517 = vmatprep.mubr.f32.mxu0 0.0
    %1518 = vmatmul.mubr.f32.gmra.mxu0 %v1434
    %v1519 = vpop.f32.mrf.mxu0
    %v1520 = vadd.f32 0.0, %v1519
    %v1521 = vpop.f32.mrf.mxu0
    %1522 = vmatprep.mubr.f32.mxu0 0.0
    %1523 = vmatmul.mubr.f32.gmra.mxu0 %v1436
    %v1524 = vpop.f32.mrf.mxu0
    %v1525 = vadd.f32 0.0, %v1524
    %v1526 = vpop.f32.mrf.mxu0
    %1527 = vdwg.mxu0
    %v1528 = vadd.f32 %v1409, %v1505
    %v1529 = vadd.f32 %v1410, %v1510
    %v1530 = vadd.f32 %v1411, %v1515
    %v1531 = vadd.f32 %v1412, %v1520
    %v1532 = vadd.f32 %v1413, %v1525
    %v1533 = vld [vmem:[#allocation6 + $0x220] sm:$0xff]
    %v1534 = vld [vmem:[#allocation6 + $0x228] sm:$0xff]
    %v1535 = vrot.slane %v1066, 4
    %v1536 = vrot.slane %v1067, 4
    %v1537 = vsel %vm56, %v1535, %v1536
    %v1538 = vrot.slane %v1068, 4
    %v1539 = vsel %vm56, %v1536, %v1538
    %v1540 = vrot.slane %v1069, 4
    %v1541 = vsel %vm56, %v1538, %v1540
    %v1542 = vrot.slane %v1070, 4
    %v1543 = vsel %vm56, %v1540, %v1542
    %v1544 = vrot.slane %v1071, 4
    %v1545 = vsel %vm56, %v1542, %v1544
    %v1546 = vsel %vm1094, %v1537, 0
    %v1548 = vsel %vm1094, %v1539, 0
    %v1550 = vsel %vm1094, %v1541, 0
    %v1552 = vsel %vm1094, %v1543, 0
    %v1554 = vsel %vm1094, %v1545, 0
    %1556 = vmatprep.subr.mxu0 0.0
    %1557 = vmatpush1.msra.mxu0 0.0
    %1558 = vmatprep.subr.mxu0 0.0
    %1559 = vmatpush1.msra.mxu0 0.0
    %1560 = vmatprep.subr.mxu0 0.0
    %1561 = vmatpush1.msra.mxu0 0.0
    %1562 = vmatprep.subr.mxu0 0.0
    %1563 = vmatpush1.msra.mxu0 0.0
    %1564 = vmatprep.subr.mxu0 0.0
    %1565 = vmatpush1.msra.mxu0 0.0
    %1566 = vmatprep.subr.mxu0 0.0
    %1567 = vmatpush1.msra.mxu0 0.0
    %1568 = vmatprep.subr.mxu0 0.0
    %1569 = vmatpush1.msra.mxu0 0.0
    %1570 = vmatprep.subr.mxu0 0.0
    %1571 = vmatpush1.msra.mxu0 0.0
    %1572 = vmatprep.subr.mxu0 0.0
    %1573 = vmatpush1.msra.mxu0 0.0
    %1574 = vmatprep.subr.mxu0 0.0
    %1575 = vmatpush1.msra.mxu0 0.0
    %1576 = vmatprep.subr.mxu0 0.0
    %1577 = vmatpush1.msra.mxu0 0.0
    %1578 = vmatprep.subr.mxu0 0.0
    %1579 = vmatpush1.msra.mxu0 0.0
    %1580 = vmatprep.subr.mxu0 0.0
    %1581 = vmatpush1.msra.mxu0 0.0
    %1582 = vmatprep.subr.mxu0 0.0
    %1583 = vmatpush1.msra.mxu0 0.0
    %1584 = vmatprep.subr.mxu0 0.0
    %1585 = vmatpush1.msra.mxu0 %v1534
    %1586 = vmatprep.subr.mxu0 0.0
    %1587 = vmatpush1.msra.mxu0 %v1533
    %1588 = vmatprep.subr.mxu0 0.0
    %1589 = vmatpush2.msra.mxu0 0.0
    %1590 = vmatprep.subr.mxu0 0.0
    %1591 = vmatpush2.msra.mxu0 0.0
    %1592 = vmatprep.subr.mxu0 0.0
    %1593 = vmatpush2.msra.mxu0 0.0
    %1594 = vmatprep.subr.mxu0 0.0
    %1595 = vmatpush2.msra.mxu0 0.0
    %1596 = vmatprep.subr.mxu0 0.0
    %1597 = vmatpush2.msra.mxu0 0.0
    %1598 = vmatprep.subr.mxu0 0.0
    %1599 = vmatpush2.msra.mxu0 0.0
    %1600 = vmatprep.subr.mxu0 0.0
    %1601 = vmatpush2.msra.mxu0 0.0
    %1602 = vmatprep.subr.mxu0 0.0
    %1603 = vmatpush2.msra.mxu0 0.0
    %1604 = vmatprep.subr.mxu0 0.0
    %1605 = vmatpush2.msra.mxu0 0.0
    %1606 = vmatprep.subr.mxu0 0.0
    %1607 = vmatpush2.msra.mxu0 0.0
    %1608 = vmatprep.subr.mxu0 0.0
    %1609 = vmatpush2.msra.mxu0 0.0
    %1610 = vmatprep.subr.mxu0 0.0
    %1611 = vmatpush2.msra.mxu0 0.0
    %1612 = vmatprep.subr.mxu0 0.0
    %1613 = vmatpush2.msra.mxu0 0.0
    %1614 = vmatprep.subr.mxu0 0.0
    %1615 = vmatpush2.msra.mxu0 0.0
    %1616 = vmatprep.subr.mxu0 0.0
    %1617 = vmatpush2.msra.mxu0 0.0
    %1618 = vmatprep.subr.mxu0 0.0
    %1619 = vmatpush2.msra.mxu0 0.0
    %1620 = vmatprep.mubr.f32.mxu0 0.0
    %1621 = vmatmul.mubr.f32.gmra.mxu0 %v1546
    %v1622 = vpop.f32.mrf.mxu0
    %v1623 = vadd.f32 0.0, %v1622
    %v1624 = vpop.f32.mrf.mxu0
    %1625 = vmatprep.mubr.f32.mxu0 0.0
    %1626 = vmatmul.mubr.f32.gmra.mxu0 %v1548
    %v1627 = vpop.f32.mrf.mxu0
    %v1628 = vadd.f32 0.0, %v1627
    %v1629 = vpop.f32.mrf.mxu0
    %1630 = vmatprep.mubr.f32.mxu0 0.0
    %1631 = vmatmul.mubr.f32.gmra.mxu0 %v1550
    %v1632 = vpop.f32.mrf.mxu0
    %v1633 = vadd.f32 0.0, %v1632
    %v1634 = vpop.f32.mrf.mxu0
    %1635 = vmatprep.mubr.f32.mxu0 0.0
    %1636 = vmatmul.mubr.f32.gmra.mxu0 %v1552
    %v1637 = vpop.f32.mrf.mxu0
    %v1638 = vadd.f32 0.0, %v1637
    %v1639 = vpop.f32.mrf.mxu0
    %1640 = vmatprep.mubr.f32.mxu0 0.0
    %1641 = vmatmul.mubr.f32.gmra.mxu0 %v1554
    %v1642 = vpop.f32.mrf.mxu0
    %v1643 = vadd.f32 0.0, %v1642
    %v1644 = vpop.f32.mrf.mxu0
    %1645 = vdwg.mxu0
    %v1646 = vadd.f32 %v1528, %v1623
    %v1647 = vadd.f32 %v1529, %v1628
    %v1648 = vadd.f32 %v1530, %v1633
    %v1649 = vadd.f32 %v1531, %v1638
    %v1650 = vadd.f32 %v1532, %v1643
    %v1651 = vld [vmem:[#allocation6 + $0x230] sm:$0x1]
    %v1652 = vlaneseq
    %v1653 = vshrl.u32 %v1652, 7
    %v1654 = vsub.s32 0, %v1653
    %v1655 = vrot.slane %v1651, %v1654
    %v1656 = vadd.f32 %v1646, %v1655
    %v1657 = vadd.f32 %v1647, %v1655
    %v1658 = vadd.f32 %v1648, %v1655
    %v1659 = vadd.f32 %v1649, %v1655
    %v1660 = vadd.f32 %v1650, %v1655
    %v1661 = vmax.f32 %v1656, 0.0
    %v1662 = vmax.f32 %v1657, 0.0
    %v1663 = vmax.f32 %v1658, 0.0
    %v1664 = vmax.f32 %v1659, 0.0
    %v1665 = vmax.f32 %v1660, 0.0
    %v1666 = vld [vmem:[#allocation6 + $0x238] sm:$0xff]
    %v1667 = vld [vmem:[#allocation6 + $0x240] sm:$0xff]
    %v1668 = vld [vmem:[#allocation6 + $0x248] sm:$0xff]
    %v1669 = vld [vmem:[#allocation6 + $0x250] sm:$0xff]
    %v1675 = vrot.slane %v1661, 1
    %v1676 = vrot.slane %v1662, 1
    %v1677 = vsel %vm1082, %v1675, %v1676
    %v1678 = vrot.slane %v1663, 1
    %v1679 = vsel %vm1082, %v1676, %v1678
    %v1680 = vrot.slane %v1664, 1
    %v1681 = vsel %vm1082, %v1678, %v1680
    %v1682 = vrot.slane %v1665, 1
    %v1683 = vsel %vm1082, %v1680, %v1682
    %v1684 = vsel %vm1094, %v1677, 0
    %v1686 = vsel %vm1094, %v1679, 0
    %v1688 = vsel %vm1094, %v1681, 0
    %v1690 = vsel %vm1094, %v1683, 0
    %v1692 = vsel %vm1094, %v1682, 0
    %1694 = vmatprep.subr.mxu0 0.0
    %1695 = vmatpush1.msra.mxu0 0.0
    %1696 = vmatprep.subr.mxu0 0.0
    %1697 = vmatpush1.msra.mxu0 0.0
    %1698 = vmatprep.subr.mxu0 0.0
    %1699 = vmatpush1.msra.mxu0 0.0
    %1700 = vmatprep.subr.mxu0 0.0
    %1701 = vmatpush1.msra.mxu0 0.0
    %1702 = vmatprep.subr.mxu0 0.0
    %1703 = vmatpush1.msra.mxu0 0.0
    %1704 = vmatprep.subr.mxu0 0.0
    %1705 = vmatpush1.msra.mxu0 0.0
    %1706 = vmatprep.subr.mxu0 0.0
    %1707 = vmatpush1.msra.mxu0 0.0
    %1708 = vmatprep.subr.mxu0 0.0
    %1709 = vmatpush1.msra.mxu0 0.0
    %1710 = vmatprep.subr.mxu0 0.0
    %1711 = vmatpush1.msra.mxu0 0.0
    %1712 = vmatprep.subr.mxu0 0.0
    %1713 = vmatpush1.msra.mxu0 0.0
    %1714 = vmatprep.subr.mxu0 0.0
    %1715 = vmatpush1.msra.mxu0 0.0
    %1716 = vmatprep.subr.mxu0 0.0
    %1717 = vmatpush1.msra.mxu0 0.0
    %1718 = vmatprep.subr.mxu0 0.0
    %1719 = vmatpush1.msra.mxu0 0.0
    %1720 = vmatprep.subr.mxu0 0.0
    %1721 = vmatpush1.msra.mxu0 0.0
    %1722 = vmatprep.subr.mxu0 0.0
    %1723 = vmatpush1.msra.mxu0 %v1669
    %1724 = vmatprep.subr.mxu0 0.0
    %1725 = vmatpush1.msra.mxu0 %v1668
    %1726 = vmatprep.subr.mxu0 0.0
    %1727 = vmatpush2.msra.mxu0 0.0
    %1728 = vmatprep.subr.mxu0 0.0
    %1729 = vmatpush2.msra.mxu0 0.0
    %1730 = vmatprep.subr.mxu0 0.0
    %1731 = vmatpush2.msra.mxu0 0.0
    %1732 = vmatprep.subr.mxu0 0.0
    %1733 = vmatpush2.msra.mxu0 0.0
    %1734 = vmatprep.subr.mxu0 0.0
    %1735 = vmatpush2.msra.mxu0 0.0
    %1736 = vmatprep.subr.mxu0 0.0
    %1737 = vmatpush2.msra.mxu0 0.0
    %1738 = vmatprep.subr.mxu0 0.0
    %1739 = vmatpush2.msra.mxu0 0.0
    %1740 = vmatprep.subr.mxu0 0.0
    %1741 = vmatpush2.msra.mxu0 0.0
    %1742 = vmatprep.subr.mxu0 0.0
    %1743 = vmatpush2.msra.mxu0 0.0
    %1744 = vmatprep.subr.mxu0 0.0
    %1745 = vmatpush2.msra.mxu0 0.0
    %1746 = vmatprep.subr.mxu0 0.0
    %1747 = vmatpush2.msra.mxu0 0.0
    %1748 = vmatprep.subr.mxu0 0.0
    %1749 = vmatpush2.msra.mxu0 0.0
    %1750 = vmatprep.subr.mxu0 0.0
    %1751 = vmatpush2.msra.mxu0 0.0
    %1752 = vmatprep.subr.mxu0 0.0
    %1753 = vmatpush2.msra.mxu0 0.0
    %1754 = vmatprep.subr.mxu0 0.0
    %1755 = vmatpush2.msra.mxu0 0.0
    %1756 = vmatprep.subr.mxu0 0.0
    %1757 = vmatpush2.msra.mxu0 0.0
    %1758 = vmatprep.mubr.f32.mxu0 0.0
    %1759 = vmatmul.mubr.f32.gmra.mxu0 %v1684
    %v1760 = vpop.f32.mrf.mxu0
    %v1761 = vadd.f32 0.0, %v1760
    %v1762 = vpop.f32.mrf.mxu0
    %1763 = vmatprep.mubr.f32.mxu0 0.0
    %1764 = vmatmul.mubr.f32.gmra.mxu0 %v1686
    %v1765 = vpop.f32.mrf.mxu0
    %v1766 = vadd.f32 0.0, %v1765
    %v1767 = vpop.f32.mrf.mxu0
    %1768 = vmatprep.mubr.f32.mxu0 0.0
    %1769 = vmatmul.mubr.f32.gmra.mxu0 %v1688
    %v1770 = vpop.f32.mrf.mxu0
    %v1771 = vadd.f32 0.0, %v1770
    %v1772 = vpop.f32.mrf.mxu0
    %1773 = vmatprep.mubr.f32.mxu0 0.0
    %1774 = vmatmul.mubr.f32.gmra.mxu0 %v1690
    %v1775 = vpop.f32.mrf.mxu0
    %v1776 = vadd.f32 0.0, %v1775
    %v1777 = vpop.f32.mrf.mxu0
    %1778 = vmatprep.mubr.f32.mxu0 0.0
    %1779 = vmatmul.mubr.f32.gmra.mxu0 %v1692
    %v1780 = vpop.f32.mrf.mxu0
    %v1781 = vadd.f32 0.0, %v1780
    %v1782 = vpop.f32.mrf.mxu0
    %1783 = vdwg.mxu0
    %v1784 = vsel %vm1094, %v1661, 0
    %v1786 = vsel %vm1094, %v1662, 0
    %v1788 = vsel %vm1094, %v1663, 0
    %v1790 = vsel %vm1094, %v1664, 0
    %v1792 = vsel %vm1094, %v1665, 0
    %1794 = vmatprep.subr.mxu0 0.0
    %1795 = vmatpush1.msra.mxu0 0.0
    %1796 = vmatprep.subr.mxu0 0.0
    %1797 = vmatpush1.msra.mxu0 0.0
    %1798 = vmatprep.subr.mxu0 0.0
    %1799 = vmatpush1.msra.mxu0 0.0
    %1800 = vmatprep.subr.mxu0 0.0
    %1801 = vmatpush1.msra.mxu0 0.0
    %1802 = vmatprep.subr.mxu0 0.0
    %1803 = vmatpush1.msra.mxu0 0.0
    %1804 = vmatprep.subr.mxu0 0.0
    %1805 = vmatpush1.msra.mxu0 0.0
    %1806 = vmatprep.subr.mxu0 0.0
    %1807 = vmatpush1.msra.mxu0 0.0
    %1808 = vmatprep.subr.mxu0 0.0
    %1809 = vmatpush1.msra.mxu0 0.0
    %1810 = vmatprep.subr.mxu0 0.0
    %1811 = vmatpush1.msra.mxu0 0.0
    %1812 = vmatprep.subr.mxu0 0.0
    %1813 = vmatpush1.msra.mxu0 0.0
    %1814 = vmatprep.subr.mxu0 0.0
    %1815 = vmatpush1.msra.mxu0 0.0
    %1816 = vmatprep.subr.mxu0 0.0
    %1817 = vmatpush1.msra.mxu0 0.0
    %1818 = vmatprep.subr.mxu0 0.0
    %1819 = vmatpush1.msra.mxu0 0.0
    %1820 = vmatprep.subr.mxu0 0.0
    %1821 = vmatpush1.msra.mxu0 0.0
    %1822 = vmatprep.subr.mxu0 0.0
    %1823 = vmatpush1.msra.mxu0 %v1667
    %1824 = vmatprep.subr.mxu0 0.0
    %1825 = vmatpush1.msra.mxu0 %v1666
    %1826 = vmatprep.subr.mxu0 0.0
    %1827 = vmatpush2.msra.mxu0 0.0
    %1828 = vmatprep.subr.mxu0 0.0
    %1829 = vmatpush2.msra.mxu0 0.0
    %1830 = vmatprep.subr.mxu0 0.0
    %1831 = vmatpush2.msra.mxu0 0.0
    %1832 = vmatprep.subr.mxu0 0.0
    %1833 = vmatpush2.msra.mxu0 0.0
    %1834 = vmatprep.subr.mxu0 0.0
    %1835 = vmatpush2.msra.mxu0 0.0
    %1836 = vmatprep.subr.mxu0 0.0
    %1837 = vmatpush2.msra.mxu0 0.0
    %1838 = vmatprep.subr.mxu0 0.0
    %1839 = vmatpush2.msra.mxu0 0.0
    %1840 = vmatprep.subr.mxu0 0.0
    %1841 = vmatpush2.msra.mxu0 0.0
    %1842 = vmatprep.subr.mxu0 0.0
    %1843 = vmatpush2.msra.mxu0 0.0
    %1844 = vmatprep.subr.mxu0 0.0
    %1845 = vmatpush2.msra.mxu0 0.0
    %1846 = vmatprep.subr.mxu0 0.0
    %1847 = vmatpush2.msra.mxu0 0.0
    %1848 = vmatprep.subr.mxu0 0.0
    %1849 = vmatpush2.msra.mxu0 0.0
    %1850 = vmatprep.subr.mxu0 0.0
    %1851 = vmatpush2.msra.mxu0 0.0
    %1852 = vmatprep.subr.mxu0 0.0
    %1853 = vmatpush2.msra.mxu0 0.0
    %1854 = vmatprep.subr.mxu0 0.0
    %1855 = vmatpush2.msra.mxu0 0.0
    %1856 = vmatprep.subr.mxu0 0.0
    %1857 = vmatpush2.msra.mxu0 0.0
    %1858 = vmatprep.mubr.f32.mxu0 0.0
    %1859 = vmatmul.mubr.f32.gmra.mxu0 %v1784
    %v1860 = vpop.f32.mrf.mxu0
    %v1861 = vadd.f32 %v1761, %v1860
    %v1862 = vpop.f32.mrf.mxu0
    %1863 = vmatprep.mubr.f32.mxu0 0.0
    %1864 = vmatmul.mubr.f32.gmra.mxu0 %v1786
    %v1865 = vpop.f32.mrf.mxu0
    %v1866 = vadd.f32 %v1766, %v1865
    %v1867 = vpop.f32.mrf.mxu0
    %1868 = vmatprep.mubr.f32.mxu0 0.0
    %1869 = vmatmul.mubr.f32.gmra.mxu0 %v1788
    %v1870 = vpop.f32.mrf.mxu0
    %v1871 = vadd.f32 %v1771, %v1870
    %v1872 = vpop.f32.mrf.mxu0
    %1873 = vmatprep.mubr.f32.mxu0 0.0
    %1874 = vmatmul.mubr.f32.gmra.mxu0 %v1790
    %v1875 = vpop.f32.mrf.mxu0
    %v1876 = vadd.f32 %v1776, %v1875
    %v1877 = vpop.f32.mrf.mxu0
    %1878 = vmatprep.mubr.f32.mxu0 0.0
    %1879 = vmatmul.mubr.f32.gmra.mxu0 %v1792
    %v1880 = vpop.f32.mrf.mxu0
    %v1881 = vadd.f32 %v1781, %v1880
    %v1882 = vpop.f32.mrf.mxu0
    %1883 = vdwg.mxu0
    %v1884 = vld [vmem:[#allocation6 + $0x258] sm:$0xff]
    %v1885 = vld [vmem:[#allocation6 + $0x260] sm:$0xff]
    %v1886 = vrot.slane %v1661, 2
    %v1887 = vrot.slane %v1662, 2
    %v1888 = vsel %vm1297, %v1886, %v1887
    %v1889 = vrot.slane %v1663, 2
    %v1890 = vsel %vm1297, %v1887, %v1889
    %v1891 = vrot.slane %v1664, 2
    %v1892 = vsel %vm1297, %v1889, %v1891
    %v1893 = vrot.slane %v1665, 2
    %v1894 = vsel %vm1297, %v1891, %v1893
    %v1895 = vsel %vm1094, %v1888, 0
    %v1897 = vsel %vm1094, %v1890, 0
    %v1899 = vsel %vm1094, %v1892, 0
    %v1901 = vsel %vm1094, %v1894, 0
    %v1903 = vsel %vm1094, %v1893, 0
    %1905 = vmatprep.subr.mxu0 0.0
    %1906 = vmatpush1.msra.mxu0 0.0
    %1907 = vmatprep.subr.mxu0 0.0
    %1908 = vmatpush1.msra.mxu0 0.0
    %1909 = vmatprep.subr.mxu0 0.0
    %1910 = vmatpush1.msra.mxu0 0.0
    %1911 = vmatprep.subr.mxu0 0.0
    %1912 = vmatpush1.msra.mxu0 0.0
    %1913 = vmatprep.subr.mxu0 0.0
    %1914 = vmatpush1.msra.mxu0 0.0
    %1915 = vmatprep.subr.mxu0 0.0
    %1916 = vmatpush1.msra.mxu0 0.0
    %1917 = vmatprep.subr.mxu0 0.0
    %1918 = vmatpush1.msra.mxu0 0.0
    %1919 = vmatprep.subr.mxu0 0.0
    %1920 = vmatpush1.msra.mxu0 0.0
    %1921 = vmatprep.subr.mxu0 0.0
    %1922 = vmatpush1.msra.mxu0 0.0
    %1923 = vmatprep.subr.mxu0 0.0
    %1924 = vmatpush1.msra.mxu0 0.0
    %1925 = vmatprep.subr.mxu0 0.0
    %1926 = vmatpush1.msra.mxu0 0.0
    %1927 = vmatprep.subr.mxu0 0.0
    %1928 = vmatpush1.msra.mxu0 0.0
    %1929 = vmatprep.subr.mxu0 0.0
    %1930 = vmatpush1.msra.mxu0 0.0
    %1931 = vmatprep.subr.mxu0 0.0
    %1932 = vmatpush1.msra.mxu0 0.0
    %1933 = vmatprep.subr.mxu0 0.0
    %1934 = vmatpush1.msra.mxu0 %v1885
    %1935 = vmatprep.subr.mxu0 0.0
    %1936 = vmatpush1.msra.mxu0 %v1884
    %1937 = vmatprep.subr.mxu0 0.0
    %1938 = vmatpush2.msra.mxu0 0.0
    %1939 = vmatprep.subr.mxu0 0.0
    %1940 = vmatpush2.msra.mxu0 0.0
    %1941 = vmatprep.subr.mxu0 0.0
    %1942 = vmatpush2.msra.mxu0 0.0
    %1943 = vmatprep.subr.mxu0 0.0
    %1944 = vmatpush2.msra.mxu0 0.0
    %1945 = vmatprep.subr.mxu0 0.0
    %1946 = vmatpush2.msra.mxu0 0.0
    %1947 = vmatprep.subr.mxu0 0.0
    %1948 = vmatpush2.msra.mxu0 0.0
    %1949 = vmatprep.subr.mxu0 0.0
    %1950 = vmatpush2.msra.mxu0 0.0
    %1951 = vmatprep.subr.mxu0 0.0
    %1952 = vmatpush2.msra.mxu0 0.0
    %1953 = vmatprep.subr.mxu0 0.0
    %1954 = vmatpush2.msra.mxu0 0.0
    %1955 = vmatprep.subr.mxu0 0.0
    %1956 = vmatpush2.msra.mxu0 0.0
    %1957 = vmatprep.subr.mxu0 0.0
    %1958 = vmatpush2.msra.mxu0 0.0
    %1959 = vmatprep.subr.mxu0 0.0
    %1960 = vmatpush2.msra.mxu0 0.0
    %1961 = vmatprep.subr.mxu0 0.0
    %1962 = vmatpush2.msra.mxu0 0.0
    %1963 = vmatprep.subr.mxu0 0.0
    %1964 = vmatpush2.msra.mxu0 0.0
    %1965 = vmatprep.subr.mxu0 0.0
    %1966 = vmatpush2.msra.mxu0 0.0
    %1967 = vmatprep.subr.mxu0 0.0
    %1968 = vmatpush2.msra.mxu0 0.0
    %1969 = vmatprep.mubr.f32.mxu0 0.0
    %1970 = vmatmul.mubr.f32.gmra.mxu0 %v1895
    %v1971 = vpop.f32.mrf.mxu0
    %v1972 = vadd.f32 0.0, %v1971
    %v1973 = vpop.f32.mrf.mxu0
    %1974 = vmatprep.mubr.f32.mxu0 0.0
    %1975 = vmatmul.mubr.f32.gmra.mxu0 %v1897
    %v1976 = vpop.f32.mrf.mxu0
    %v1977 = vadd.f32 0.0, %v1976
    %v1978 = vpop.f32.mrf.mxu0
    %1979 = vmatprep.mubr.f32.mxu0 0.0
    %1980 = vmatmul.mubr.f32.gmra.mxu0 %v1899
    %v1981 = vpop.f32.mrf.mxu0
    %v1982 = vadd.f32 0.0, %v1981
    %v1983 = vpop.f32.mrf.mxu0
    %1984 = vmatprep.mubr.f32.mxu0 0.0
    %1985 = vmatmul.mubr.f32.gmra.mxu0 %v1901
    %v1986 = vpop.f32.mrf.mxu0
    %v1987 = vadd.f32 0.0, %v1986
    %v1988 = vpop.f32.mrf.mxu0
    %1989 = vmatprep.mubr.f32.mxu0 0.0
    %1990 = vmatmul.mubr.f32.gmra.mxu0 %v1903
    %v1991 = vpop.f32.mrf.mxu0
    %v1992 = vadd.f32 0.0, %v1991
    %v1993 = vpop.f32.mrf.mxu0
    %1994 = vdwg.mxu0
    %v1995 = vadd.f32 %v1861, %v1972
    %v1996 = vadd.f32 %v1866, %v1977
    %v1997 = vadd.f32 %v1871, %v1982
    %v1998 = vadd.f32 %v1876, %v1987
    %v1999 = vadd.f32 %v1881, %v1992
    %v2000 = vld [vmem:[#allocation6 + $0x268] sm:$0xff]
    %v2001 = vld [vmem:[#allocation6 + $0x270] sm:$0xff]
    %v2002 = vrot.slane %v1661, 3
    %v2003 = vrot.slane %v1662, 3
    %v2004 = vsel %vm1416, %v2002, %v2003
    %v2005 = vrot.slane %v1663, 3
    %v2006 = vsel %vm1416, %v2003, %v2005
    %v2007 = vrot.slane %v1664, 3
    %v2008 = vsel %vm1416, %v2005, %v2007
    %v2009 = vrot.slane %v1665, 3
    %v2010 = vsel %vm1416, %v2007, %v2009
    %v2011 = vsel %vm1094, %v2004, 0
    %v2013 = vsel %vm1094, %v2006, 0
    %v2015 = vsel %vm1094, %v2008, 0
    %v2017 = vsel %vm1094, %v2010, 0
    %v2019 = vsel %vm1094, %v2009, 0
    %2021 = vmatprep.subr.mxu0 0.0
    %2022 = vmatpush1.msra.mxu0 0.0
    %2023 = vmatprep.subr.mxu0 0.0
    %2024 = vmatpush1.msra.mxu0 0.0
    %2025 = vmatprep.subr.mxu0 0.0
    %2026 = vmatpush1.msra.mxu0 0.0
    %2027 = vmatprep.subr.mxu0 0.0
    %2028 = vmatpush1.msra.mxu0 0.0
    %2029 = vmatprep.subr.mxu0 0.0
    %2030 = vmatpush1.msra.mxu0 0.0
    %2031 = vmatprep.subr.mxu0 0.0
    %2032 = vmatpush1.msra.mxu0 0.0
    %2033 = vmatprep.subr.mxu0 0.0
    %2034 = vmatpush1.msra.mxu0 0.0
    %2035 = vmatprep.subr.mxu0 0.0
    %2036 = vmatpush1.msra.mxu0 0.0
    %2037 = vmatprep.subr.mxu0 0.0
    %2038 = vmatpush1.msra.mxu0 0.0
    %2039 = vmatprep.subr.mxu0 0.0
    %2040 = vmatpush1.msra.mxu0 0.0
    %2041 = vmatprep.subr.mxu0 0.0
    %2042 = vmatpush1.msra.mxu0 0.0
    %2043 = vmatprep.subr.mxu0 0.0
    %2044 = vmatpush1.msra.mxu0 0.0
    %2045 = vmatprep.subr.mxu0 0.0
    %2046 = vmatpush1.msra.mxu0 0.0
    %2047 = vmatprep.subr.mxu0 0.0
    %2048 = vmatpush1.msra.mxu0 0.0
    %2049 = vmatprep.subr.mxu0 0.0
    %2050 = vmatpush1.msra.mxu0 %v2001
    %2051 = vmatprep.subr.mxu0 0.0
    %2052 = vmatpush1.msra.mxu0 %v2000
    %2053 = vmatprep.subr.mxu0 0.0
    %2054 = vmatpush2.msra.mxu0 0.0
    %2055 = vmatprep.subr.mxu0 0.0
    %2056 = vmatpush2.msra.mxu0 0.0
    %2057 = vmatprep.subr.mxu0 0.0
    %2058 = vmatpush2.msra.mxu0 0.0
    %2059 = vmatprep.subr.mxu0 0.0
    %2060 = vmatpush2.msra.mxu0 0.0
    %2061 = vmatprep.subr.mxu0 0.0
    %2062 = vmatpush2.msra.mxu0 0.0
    %2063 = vmatprep.subr.mxu0 0.0
    %2064 = vmatpush2.msra.mxu0 0.0
    %2065 = vmatprep.subr.mxu0 0.0
    %2066 = vmatpush2.msra.mxu0 0.0
    %2067 = vmatprep.subr.mxu0 0.0
    %2068 = vmatpush2.msra.mxu0 0.0
    %2069 = vmatprep.subr.mxu0 0.0
    %2070 = vmatpush2.msra.mxu0 0.0
    %2071 = vmatprep.subr.mxu0 0.0
    %2072 = vmatpush2.msra.mxu0 0.0
    %2073 = vmatprep.subr.mxu0 0.0
    %2074 = vmatpush2.msra.mxu0 0.0
    %2075 = vmatprep.subr.mxu0 0.0
    %2076 = vmatpush2.msra.mxu0 0.0
    %2077 = vmatprep.subr.mxu0 0.0
    %2078 = vmatpush2.msra.mxu0 0.0
    %2079 = vmatprep.subr.mxu0 0.0
    %2080 = vmatpush2.msra.mxu0 0.0
    %2081 = vmatprep.subr.mxu0 0.0
    %2082 = vmatpush2.msra.mxu0 0.0
    %2083 = vmatprep.subr.mxu0 0.0
    %2084 = vmatpush2.msra.mxu0 0.0
    %2085 = vmatprep.mubr.f32.mxu0 0.0
    %2086 = vmatmul.mubr.f32.gmra.mxu0 %v2011
    %v2087 = vpop.f32.mrf.mxu0
    %v2088 = vadd.f32 0.0, %v2087
    %v2089 = vpop.f32.mrf.mxu0
    %2090 = vmatprep.mubr.f32.mxu0 0.0
    %2091 = vmatmul.mubr.f32.gmra.mxu0 %v2013
    %v2092 = vpop.f32.mrf.mxu0
    %v2093 = vadd.f32 0.0, %v2092
    %v2094 = vpop.f32.mrf.mxu0
    %2095 = vmatprep.mubr.f32.mxu0 0.0
    %2096 = vmatmul.mubr.f32.gmra.mxu0 %v2015
    %v2097 = vpop.f32.mrf.mxu0
    %v2098 = vadd.f32 0.0, %v2097
    %v2099 = vpop.f32.mrf.mxu0
    %2100 = vmatprep.mubr.f32.mxu0 0.0
    %2101 = vmatmul.mubr.f32.gmra.mxu0 %v2017
    %v2102 = vpop.f32.mrf.mxu0
    %v2103 = vadd.f32 0.0, %v2102
    %v2104 = vpop.f32.mrf.mxu0
    %2105 = vmatprep.mubr.f32.mxu0 0.0
    %2106 = vmatmul.mubr.f32.gmra.mxu0 %v2019
    %v2107 = vpop.f32.mrf.mxu0
    %v2108 = vadd.f32 0.0, %v2107
    %v2109 = vpop.f32.mrf.mxu0
    %2110 = vdwg.mxu0
    %v2111 = vadd.f32 %v1995, %v2088
    %v2112 = vadd.f32 %v1996, %v2093
    %v2113 = vadd.f32 %v1997, %v2098
    %v2114 = vadd.f32 %v1998, %v2103
    %v2115 = vadd.f32 %v1999, %v2108
    %v2116 = vld [vmem:[#allocation6 + $0x278] sm:$0xff]
    %v2117 = vld [vmem:[#allocation6 + $0x280] sm:$0xff]
    %v2118 = vrot.slane %v1661, 4
    %v2119 = vrot.slane %v1662, 4
    %v2120 = vsel %vm56, %v2118, %v2119
    %v2121 = vrot.slane %v1663, 4
    %v2122 = vsel %vm56, %v2119, %v2121
    %v2123 = vrot.slane %v1664, 4
    %v2124 = vsel %vm56, %v2121, %v2123
    %v2125 = vrot.slane %v1665, 4
    %v2126 = vsel %vm56, %v2123, %v2125
    %v2127 = vsel %vm1094, %v2120, 0
    %v2129 = vsel %vm1094, %v2122, 0
    %v2131 = vsel %vm1094, %v2124, 0
    %v2133 = vsel %vm1094, %v2126, 0
    %v2135 = vsel %vm1094, %v2125, 0
    %2137 = vmatprep.subr.mxu0 0.0
    %2138 = vmatpush1.msra.mxu0 0.0
    %2139 = vmatprep.subr.mxu0 0.0
    %2140 = vmatpush1.msra.mxu0 0.0
    %2141 = vmatprep.subr.mxu0 0.0
    %2142 = vmatpush1.msra.mxu0 0.0
    %2143 = vmatprep.subr.mxu0 0.0
    %2144 = vmatpush1.msra.mxu0 0.0
    %2145 = vmatprep.subr.mxu0 0.0
    %2146 = vmatpush1.msra.mxu0 0.0
    %2147 = vmatprep.subr.mxu0 0.0
    %2148 = vmatpush1.msra.mxu0 0.0
    %2149 = vmatprep.subr.mxu0 0.0
    %2150 = vmatpush1.msra.mxu0 0.0
    %2151 = vmatprep.subr.mxu0 0.0
    %2152 = vmatpush1.msra.mxu0 0.0
    %2153 = vmatprep.subr.mxu0 0.0
    %2154 = vmatpush1.msra.mxu0 0.0
    %2155 = vmatprep.subr.mxu0 0.0
    %2156 = vmatpush1.msra.mxu0 0.0
    %2157 = vmatprep.subr.mxu0 0.0
    %2158 = vmatpush1.msra.mxu0 0.0
    %2159 = vmatprep.subr.mxu0 0.0
    %2160 = vmatpush1.msra.mxu0 0.0
    %2161 = vmatprep.subr.mxu0 0.0
    %2162 = vmatpush1.msra.mxu0 0.0
    %2163 = vmatprep.subr.mxu0 0.0
    %2164 = vmatpush1.msra.mxu0 0.0
    %2165 = vmatprep.subr.mxu0 0.0
    %2166 = vmatpush1.msra.mxu0 %v2117
    %2167 = vmatprep.subr.mxu0 0.0
    %2168 = vmatpush1.msra.mxu0 %v2116
    %2169 = vmatprep.subr.mxu0 0.0
    %2170 = vmatpush2.msra.mxu0 0.0
    %2171 = vmatprep.subr.mxu0 0.0
    %2172 = vmatpush2.msra.mxu0 0.0
    %2173 = vmatprep.subr.mxu0 0.0
    %2174 = vmatpush2.msra.mxu0 0.0
    %2175 = vmatprep.subr.mxu0 0.0
    %2176 = vmatpush2.msra.mxu0 0.0
    %2177 = vmatprep.subr.mxu0 0.0
    %2178 = vmatpush2.msra.mxu0 0.0
    %2179 = vmatprep.subr.mxu0 0.0
    %2180 = vmatpush2.msra.mxu0 0.0
    %2181 = vmatprep.subr.mxu0 0.0
    %2182 = vmatpush2.msra.mxu0 0.0
    %2183 = vmatprep.subr.mxu0 0.0
    %2184 = vmatpush2.msra.mxu0 0.0
    %2185 = vmatprep.subr.mxu0 0.0
    %2186 = vmatpush2.msra.mxu0 0.0
    %2187 = vmatprep.subr.mxu0 0.0
    %2188 = vmatpush2.msra.mxu0 0.0
    %2189 = vmatprep.subr.mxu0 0.0
    %2190 = vmatpush2.msra.mxu0 0.0
    %2191 = vmatprep.subr.mxu0 0.0
    %2192 = vmatpush2.msra.mxu0 0.0
    %2193 = vmatprep.subr.mxu0 0.0
    %2194 = vmatpush2.msra.mxu0 0.0
    %2195 = vmatprep.subr.mxu0 0.0
    %2196 = vmatpush2.msra.mxu0 0.0
    %2197 = vmatprep.subr.mxu0 0.0
    %2198 = vmatpush2.msra.mxu0 0.0
    %2199 = vmatprep.subr.mxu0 0.0
    %2200 = vmatpush2.msra.mxu0 0.0
    %2201 = vmatprep.mubr.f32.mxu0 0.0
    %2202 = vmatmul.mubr.f32.gmra.mxu0 %v2127
    %v2203 = vpop.f32.mrf.mxu0
    %v2204 = vadd.f32 0.0, %v2203
    %v2205 = vpop.f32.mrf.mxu0
    %2206 = vmatprep.mubr.f32.mxu0 0.0
    %2207 = vmatmul.mubr.f32.gmra.mxu0 %v2129
    %v2208 = vpop.f32.mrf.mxu0
    %v2209 = vadd.f32 0.0, %v2208
    %v2210 = vpop.f32.mrf.mxu0
    %2211 = vmatprep.mubr.f32.mxu0 0.0
    %2212 = vmatmul.mubr.f32.gmra.mxu0 %v2131
    %v2213 = vpop.f32.mrf.mxu0
    %v2214 = vadd.f32 0.0, %v2213
    %v2215 = vpop.f32.mrf.mxu0
    %2216 = vmatprep.mubr.f32.mxu0 0.0
    %2217 = vmatmul.mubr.f32.gmra.mxu0 %v2133
    %v2218 = vpop.f32.mrf.mxu0
    %v2219 = vadd.f32 0.0, %v2218
    %v2220 = vpop.f32.mrf.mxu0
    %2221 = vmatprep.mubr.f32.mxu0 0.0
    %2222 = vmatmul.mubr.f32.gmra.mxu0 %v2135
    %v2223 = vpop.f32.mrf.mxu0
    %v2224 = vadd.f32 0.0, %v2223
    %v2225 = vpop.f32.mrf.mxu0
    %2226 = vdwg.mxu0
    %v2227 = vadd.f32 %v2111, %v2204
    %v2228 = vadd.f32 %v2112, %v2209
    %v2229 = vadd.f32 %v2113, %v2214
    %v2230 = vadd.f32 %v2114, %v2219
    %v2231 = vadd.f32 %v2115, %v2224
    %v2232 = vld [vmem:[#allocation6 + $0x288] sm:$0x1]
    %v2233 = vlaneseq
    %v2234 = vshrl.u32 %v2233, 7
    %v2235 = vsub.s32 0, %v2234
    %v2236 = vrot.slane %v2232, %v2235
    %v2237 = vadd.f32 %v2227, %v2236
    %v2238 = vadd.f32 %v2228, %v2236
    %v2239 = vadd.f32 %v2229, %v2236
    %v2240 = vadd.f32 %v2230, %v2236
    %v2241 = vadd.f32 %v2231, %v2236
    %v2242 = vmax.f32 %v2237, 0.0
    %v2243 = vmax.f32 %v2238, 0.0
    %v2244 = vmax.f32 %v2239, 0.0
    %v2245 = vmax.f32 %v2240, 0.0
    %v2246 = vmax.f32 %v2241, 0.0
    %v2247 = vld [vmem:[#allocation6 + $0x290] sm:$0xff]
    %v2248 = vld [vmem:[#allocation6 + $0x298] sm:$0xff]
    %v2249 = vld [vmem:[#allocation6 + $0x2a0] sm:$0xff]
    %v2250 = vld [vmem:[#allocation6 + $0x2a8] sm:$0xff]
    %v2256 = vrot.slane %v2242, 1
    %v2257 = vrot.slane %v2243, 1
    %v2258 = vsel %vm1082, %v2256, %v2257
    %v2259 = vrot.slane %v2244, 1
    %v2260 = vsel %vm1082, %v2257, %v2259
    %v2261 = vrot.slane %v2245, 1
    %v2262 = vsel %vm1082, %v2259, %v2261
    %v2263 = vrot.slane %v2246, 1
    %v2264 = vsel %vm1082, %v2261, %v2263
    %v2265 = vsel %vm1094, %v2258, 0
    %v2267 = vsel %vm1094, %v2260, 0
    %v2269 = vsel %vm1094, %v2262, 0
    %v2271 = vsel %vm1094, %v2264, 0
    %2273 = vmatprep.subr.mxu0 0.0
    %2274 = vmatpush1.msra.mxu0 0.0
    %2275 = vmatprep.subr.mxu0 0.0
    %2276 = vmatpush1.msra.mxu0 0.0
    %2277 = vmatprep.subr.mxu0 0.0
    %2278 = vmatpush1.msra.mxu0 0.0
    %2279 = vmatprep.subr.mxu0 0.0
    %2280 = vmatpush1.msra.mxu0 0.0
    %2281 = vmatprep.subr.mxu0 0.0
    %2282 = vmatpush1.msra.mxu0 0.0
    %2283 = vmatprep.subr.mxu0 0.0
    %2284 = vmatpush1.msra.mxu0 0.0
    %2285 = vmatprep.subr.mxu0 0.0
    %2286 = vmatpush1.msra.mxu0 0.0
    %2287 = vmatprep.subr.mxu0 0.0
    %2288 = vmatpush1.msra.mxu0 0.0
    %2289 = vmatprep.subr.mxu0 0.0
    %2290 = vmatpush1.msra.mxu0 0.0
    %2291 = vmatprep.subr.mxu0 0.0
    %2292 = vmatpush1.msra.mxu0 0.0
    %2293 = vmatprep.subr.mxu0 0.0
    %2294 = vmatpush1.msra.mxu0 0.0
    %2295 = vmatprep.subr.mxu0 0.0
    %2296 = vmatpush1.msra.mxu0 0.0
    %2297 = vmatprep.subr.mxu0 0.0
    %2298 = vmatpush1.msra.mxu0 0.0
    %2299 = vmatprep.subr.mxu0 0.0
    %2300 = vmatpush1.msra.mxu0 0.0
    %2301 = vmatprep.subr.mxu0 0.0
    %2302 = vmatpush1.msra.mxu0 %v2250
    %2303 = vmatprep.subr.mxu0 0.0
    %2304 = vmatpush1.msra.mxu0 %v2249
    %2305 = vmatprep.subr.mxu0 0.0
    %2306 = vmatpush2.msra.mxu0 0.0
    %2307 = vmatprep.subr.mxu0 0.0
    %2308 = vmatpush2.msra.mxu0 0.0
    %2309 = vmatprep.subr.mxu0 0.0
    %2310 = vmatpush2.msra.mxu0 0.0
    %2311 = vmatprep.subr.mxu0 0.0
    %2312 = vmatpush2.msra.mxu0 0.0
    %2313 = vmatprep.subr.mxu0 0.0
    %2314 = vmatpush2.msra.mxu0 0.0
    %2315 = vmatprep.subr.mxu0 0.0
    %2316 = vmatpush2.msra.mxu0 0.0
    %2317 = vmatprep.subr.mxu0 0.0
    %2318 = vmatpush2.msra.mxu0 0.0
    %2319 = vmatprep.subr.mxu0 0.0
    %2320 = vmatpush2.msra.mxu0 0.0
    %2321 = vmatprep.subr.mxu0 0.0
    %2322 = vmatpush2.msra.mxu0 0.0
    %2323 = vmatprep.subr.mxu0 0.0
    %2324 = vmatpush2.msra.mxu0 0.0
    %2325 = vmatprep.subr.mxu0 0.0
    %2326 = vmatpush2.msra.mxu0 0.0
    %2327 = vmatprep.subr.mxu0 0.0
    %2328 = vmatpush2.msra.mxu0 0.0
    %2329 = vmatprep.subr.mxu0 0.0
    %2330 = vmatpush2.msra.mxu0 0.0
    %2331 = vmatprep.subr.mxu0 0.0
    %2332 = vmatpush2.msra.mxu0 0.0
    %2333 = vmatprep.subr.mxu0 0.0
    %2334 = vmatpush2.msra.mxu0 0.0
    %2335 = vmatprep.subr.mxu0 0.0
    %2336 = vmatpush2.msra.mxu0 0.0
    %2337 = vmatprep.mubr.f32.mxu0 0.0
    %2338 = vmatmul.mubr.f32.gmra.mxu0 %v2265
    %v2339 = vpop.f32.mrf.mxu0
    %v2340 = vadd.f32 0.0, %v2339
    %v2341 = vpop.f32.mrf.mxu0
    %2342 = vmatprep.mubr.f32.mxu0 0.0
    %2343 = vmatmul.mubr.f32.gmra.mxu0 %v2267
    %v2344 = vpop.f32.mrf.mxu0
    %v2345 = vpop.f32.mrf.mxu0
    %2346 = vmatprep.mubr.f32.mxu0 0.0
    %2347 = vmatmul.mubr.f32.gmra.mxu0 %v2269
    %v2348 = vpop.f32.mrf.mxu0
    %v2349 = vpop.f32.mrf.mxu0
    %2350 = vmatprep.mubr.f32.mxu0 0.0
    %2351 = vmatmul.mubr.f32.gmra.mxu0 %v2271
    %v2352 = vpop.f32.mrf.mxu0
    %v2353 = vadd.f32 0.0, %v2352
    %v2354 = vpop.f32.mrf.mxu0
    %2355 = vdwg.mxu0
    %v2356 = vsel %vm1094, %v2242, 0
    %v2358 = vsel %vm1094, %v2243, 0
    %v2360 = vsel %vm1094, %v2244, 0
    %v2362 = vsel %vm1094, %v2245, 0
    %2364 = vmatprep.subr.mxu0 0.0
    %2365 = vmatpush1.msra.mxu0 0.0
    %2366 = vmatprep.subr.mxu0 0.0
    %2367 = vmatpush1.msra.mxu0 0.0
    %2368 = vmatprep.subr.mxu0 0.0
    %2369 = vmatpush1.msra.mxu0 0.0
    %2370 = vmatprep.subr.mxu0 0.0
    %2371 = vmatpush1.msra.mxu0 0.0
    %2372 = vmatprep.subr.mxu0 0.0
    %2373 = vmatpush1.msra.mxu0 0.0
    %2374 = vmatprep.subr.mxu0 0.0
    %2375 = vmatpush1.msra.mxu0 0.0
    %2376 = vmatprep.subr.mxu0 0.0
    %2377 = vmatpush1.msra.mxu0 0.0
    %2378 = vmatprep.subr.mxu0 0.0
    %2379 = vmatpush1.msra.mxu0 0.0
    %2380 = vmatprep.subr.mxu0 0.0
    %2381 = vmatpush1.msra.mxu0 0.0
    %2382 = vmatprep.subr.mxu0 0.0
    %2383 = vmatpush1.msra.mxu0 0.0
    %2384 = vmatprep.subr.mxu0 0.0
    %2385 = vmatpush1.msra.mxu0 0.0
    %2386 = vmatprep.subr.mxu0 0.0
    %2387 = vmatpush1.msra.mxu0 0.0
    %2388 = vmatprep.subr.mxu0 0.0
    %2389 = vmatpush1.msra.mxu0 0.0
    %2390 = vmatprep.subr.mxu0 0.0
    %2391 = vmatpush1.msra.mxu0 0.0
    %2392 = vmatprep.subr.mxu0 0.0
    %2393 = vmatpush1.msra.mxu0 %v2248
    %2394 = vmatprep.subr.mxu0 0.0
    %2395 = vmatpush1.msra.mxu0 %v2247
    %2396 = vmatprep.subr.mxu0 0.0
    %2397 = vmatpush2.msra.mxu0 0.0
    %2398 = vmatprep.subr.mxu0 0.0
    %2399 = vmatpush2.msra.mxu0 0.0
    %2400 = vmatprep.subr.mxu0 0.0
    %2401 = vmatpush2.msra.mxu0 0.0
    %2402 = vmatprep.subr.mxu0 0.0
    %2403 = vmatpush2.msra.mxu0 0.0
    %2404 = vmatprep.subr.mxu0 0.0
    %2405 = vmatpush2.msra.mxu0 0.0
    %2406 = vmatprep.subr.mxu0 0.0
    %2407 = vmatpush2.msra.mxu0 0.0
    %2408 = vmatprep.subr.mxu0 0.0
    %2409 = vmatpush2.msra.mxu0 0.0
    %2410 = vmatprep.subr.mxu0 0.0
    %2411 = vmatpush2.msra.mxu0 0.0
    %2412 = vmatprep.subr.mxu0 0.0
    %2413 = vmatpush2.msra.mxu0 0.0
    %2414 = vmatprep.subr.mxu0 0.0
    %2415 = vmatpush2.msra.mxu0 0.0
    %2416 = vmatprep.subr.mxu0 0.0
    %2417 = vmatpush2.msra.mxu0 0.0
    %2418 = vmatprep.subr.mxu0 0.0
    %2419 = vmatpush2.msra.mxu0 0.0
    %2420 = vmatprep.subr.mxu0 0.0
    %2421 = vmatpush2.msra.mxu0 0.0
    %2422 = vmatprep.subr.mxu0 0.0
    %2423 = vmatpush2.msra.mxu0 0.0
    %2424 = vmatprep.subr.mxu0 0.0
    %2425 = vmatpush2.msra.mxu0 0.0
    %2426 = vmatprep.subr.mxu0 0.0
    %2427 = vmatpush2.msra.mxu0 0.0
    %2428 = vmatprep.mubr.f32.mxu0 0.0
    %2429 = vmatmul.mubr.f32.gmra.mxu0 %v2356
    %v2430 = vpop.f32.mrf.mxu0
    %v2431 = vadd.f32 %v2340, %v2430
    %v2432 = vpop.f32.mrf.mxu0
    %2433 = vmatprep.mubr.f32.mxu0 0.0
    %2434 = vmatmul.mubr.f32.gmra.mxu0 %v2358
    %v2435 = vpop.f32.mrf.mxu0
    %v2436 = vpop.f32.mrf.mxu0
    %2437 = vmatprep.mubr.f32.mxu0 0.0
    %2438 = vmatmul.mubr.f32.gmra.mxu0 %v2360
    %v2439 = vpop.f32.mrf.mxu0
    %v2440 = vpop.f32.mrf.mxu0
    %2441 = vmatprep.mubr.f32.mxu0 0.0
    %2442 = vmatmul.mubr.f32.gmra.mxu0 %v2362
    %v2443 = vpop.f32.mrf.mxu0
    %v2444 = vadd.f32 %v2353, %v2443
    %v2445 = vpop.f32.mrf.mxu0
    %2446 = vdwg.mxu0
    %v2447 = vld [vmem:[#allocation6 + $0x2b0] sm:$0xff]
    %v2448 = vld [vmem:[#allocation6 + $0x2b8] sm:$0xff]
    %v2449 = vrot.slane %v2242, 2
    %v2450 = vrot.slane %v2243, 2
    %v2451 = vsel %vm1297, %v2449, %v2450
    %v2452 = vrot.slane %v2244, 2
    %v2453 = vsel %vm1297, %v2450, %v2452
    %v2454 = vrot.slane %v2245, 2
    %v2455 = vsel %vm1297, %v2452, %v2454
    %v2456 = vrot.slane %v2246, 2
    %v2457 = vsel %vm1297, %v2454, %v2456
    %v2458 = vsel %vm1094, %v2451, 0
    %v2460 = vsel %vm1094, %v2453, 0
    %v2462 = vsel %vm1094, %v2455, 0
    %v2464 = vsel %vm1094, %v2457, 0
    %2466 = vmatprep.subr.mxu0 0.0
    %2467 = vmatpush1.msra.mxu0 0.0
    %2468 = vmatprep.subr.mxu0 0.0
    %2469 = vmatpush1.msra.mxu0 0.0
    %2470 = vmatprep.subr.mxu0 0.0
    %2471 = vmatpush1.msra.mxu0 0.0
    %2472 = vmatprep.subr.mxu0 0.0
    %2473 = vmatpush1.msra.mxu0 0.0
    %2474 = vmatprep.subr.mxu0 0.0
    %2475 = vmatpush1.msra.mxu0 0.0
    %2476 = vmatprep.subr.mxu0 0.0
    %2477 = vmatpush1.msra.mxu0 0.0
    %2478 = vmatprep.subr.mxu0 0.0
    %2479 = vmatpush1.msra.mxu0 0.0
    %2480 = vmatprep.subr.mxu0 0.0
    %2481 = vmatpush1.msra.mxu0 0.0
    %2482 = vmatprep.subr.mxu0 0.0
    %2483 = vmatpush1.msra.mxu0 0.0
    %2484 = vmatprep.subr.mxu0 0.0
    %2485 = vmatpush1.msra.mxu0 0.0
    %2486 = vmatprep.subr.mxu0 0.0
    %2487 = vmatpush1.msra.mxu0 0.0
    %2488 = vmatprep.subr.mxu0 0.0
    %2489 = vmatpush1.msra.mxu0 0.0
    %2490 = vmatprep.subr.mxu0 0.0
    %2491 = vmatpush1.msra.mxu0 0.0
    %2492 = vmatprep.subr.mxu0 0.0
    %2493 = vmatpush1.msra.mxu0 0.0
    %2494 = vmatprep.subr.mxu0 0.0
    %2495 = vmatpush1.msra.mxu0 %v2448
    %2496 = vmatprep.subr.mxu0 0.0
    %2497 = vmatpush1.msra.mxu0 %v2447
    %2498 = vmatprep.subr.mxu0 0.0
    %2499 = vmatpush2.msra.mxu0 0.0
    %2500 = vmatprep.subr.mxu0 0.0
    %2501 = vmatpush2.msra.mxu0 0.0
    %2502 = vmatprep.subr.mxu0 0.0
    %2503 = vmatpush2.msra.mxu0 0.0
    %2504 = vmatprep.subr.mxu0 0.0
    %2505 = vmatpush2.msra.mxu0 0.0
    %2506 = vmatprep.subr.mxu0 0.0
    %2507 = vmatpush2.msra.mxu0 0.0
    %2508 = vmatprep.subr.mxu0 0.0
    %2509 = vmatpush2.msra.mxu0 0.0
    %2510 = vmatprep.subr.mxu0 0.0
    %2511 = vmatpush2.msra.mxu0 0.0
    %2512 = vmatprep.subr.mxu0 0.0
    %2513 = vmatpush2.msra.mxu0 0.0
    %2514 = vmatprep.subr.mxu0 0.0
    %2515 = vmatpush2.msra.mxu0 0.0
    %2516 = vmatprep.subr.mxu0 0.0
    %2517 = vmatpush2.msra.mxu0 0.0
    %2518 = vmatprep.subr.mxu0 0.0
    %2519 = vmatpush2.msra.mxu0 0.0
    %2520 = vmatprep.subr.mxu0 0.0
    %2521 = vmatpush2.msra.mxu0 0.0
    %2522 = vmatprep.subr.mxu0 0.0
    %2523 = vmatpush2.msra.mxu0 0.0
    %2524 = vmatprep.subr.mxu0 0.0
    %2525 = vmatpush2.msra.mxu0 0.0
    %2526 = vmatprep.subr.mxu0 0.0
    %2527 = vmatpush2.msra.mxu0 0.0
    %2528 = vmatprep.subr.mxu0 0.0
    %2529 = vmatpush2.msra.mxu0 0.0
    %2530 = vmatprep.mubr.f32.mxu0 0.0
    %2531 = vmatmul.mubr.f32.gmra.mxu0 %v2458
    %v2532 = vpop.f32.mrf.mxu0
    %v2533 = vadd.f32 0.0, %v2532
    %v2534 = vpop.f32.mrf.mxu0
    %2535 = vmatprep.mubr.f32.mxu0 0.0
    %2536 = vmatmul.mubr.f32.gmra.mxu0 %v2460
    %v2537 = vpop.f32.mrf.mxu0
    %v2538 = vpop.f32.mrf.mxu0
    %2539 = vmatprep.mubr.f32.mxu0 0.0
    %2540 = vmatmul.mubr.f32.gmra.mxu0 %v2462
    %v2541 = vpop.f32.mrf.mxu0
    %v2542 = vpop.f32.mrf.mxu0
    %2543 = vmatprep.mubr.f32.mxu0 0.0
    %2544 = vmatmul.mubr.f32.gmra.mxu0 %v2464
    %v2545 = vpop.f32.mrf.mxu0
    %v2546 = vadd.f32 0.0, %v2545
    %v2547 = vpop.f32.mrf.mxu0
    %2548 = vdwg.mxu0
    %v2549 = vadd.f32 %v2431, %v2533
    %v2550 = vadd.f32 %v2444, %v2546
    %v2551 = vld [vmem:[#allocation6 + $0x2c0] sm:$0xff]
    %v2552 = vld [vmem:[#allocation6 + $0x2c8] sm:$0xff]
    %v2553 = vrot.slane %v2242, 3
    %v2554 = vrot.slane %v2243, 3
    %v2555 = vsel %vm1416, %v2553, %v2554
    %v2556 = vrot.slane %v2244, 3
    %v2557 = vsel %vm1416, %v2554, %v2556
    %v2558 = vrot.slane %v2245, 3
    %v2559 = vsel %vm1416, %v2556, %v2558
    %v2560 = vrot.slane %v2246, 3
    %v2561 = vsel %vm1416, %v2558, %v2560
    %v2562 = vsel %vm1094, %v2555, 0
    %v2564 = vsel %vm1094, %v2557, 0
    %v2566 = vsel %vm1094, %v2559, 0
    %v2568 = vsel %vm1094, %v2561, 0
    %2570 = vmatprep.subr.mxu0 0.0
    %2571 = vmatpush1.msra.mxu0 0.0
    %2572 = vmatprep.subr.mxu0 0.0
    %2573 = vmatpush1.msra.mxu0 0.0
    %2574 = vmatprep.subr.mxu0 0.0
    %2575 = vmatpush1.msra.mxu0 0.0
    %2576 = vmatprep.subr.mxu0 0.0
    %2577 = vmatpush1.msra.mxu0 0.0
    %2578 = vmatprep.subr.mxu0 0.0
    %2579 = vmatpush1.msra.mxu0 0.0
    %2580 = vmatprep.subr.mxu0 0.0
    %2581 = vmatpush1.msra.mxu0 0.0
    %2582 = vmatprep.subr.mxu0 0.0
    %2583 = vmatpush1.msra.mxu0 0.0
    %2584 = vmatprep.subr.mxu0 0.0
    %2585 = vmatpush1.msra.mxu0 0.0
    %2586 = vmatprep.subr.mxu0 0.0
    %2587 = vmatpush1.msra.mxu0 0.0
    %2588 = vmatprep.subr.mxu0 0.0
    %2589 = vmatpush1.msra.mxu0 0.0
    %2590 = vmatprep.subr.mxu0 0.0
    %2591 = vmatpush1.msra.mxu0 0.0
    %2592 = vmatprep.subr.mxu0 0.0
    %2593 = vmatpush1.msra.mxu0 0.0
    %2594 = vmatprep.subr.mxu0 0.0
    %2595 = vmatpush1.msra.mxu0 0.0
    %2596 = vmatprep.subr.mxu0 0.0
    %2597 = vmatpush1.msra.mxu0 0.0
    %2598 = vmatprep.subr.mxu0 0.0
    %2599 = vmatpush1.msra.mxu0 %v2552
    %2600 = vmatprep.subr.mxu0 0.0
    %2601 = vmatpush1.msra.mxu0 %v2551
    %2602 = vmatprep.subr.mxu0 0.0
    %2603 = vmatpush2.msra.mxu0 0.0
    %2604 = vmatprep.subr.mxu0 0.0
    %2605 = vmatpush2.msra.mxu0 0.0
    %2606 = vmatprep.subr.mxu0 0.0
    %2607 = vmatpush2.msra.mxu0 0.0
    %2608 = vmatprep.subr.mxu0 0.0
    %2609 = vmatpush2.msra.mxu0 0.0
    %2610 = vmatprep.subr.mxu0 0.0
    %2611 = vmatpush2.msra.mxu0 0.0
    %2612 = vmatprep.subr.mxu0 0.0
    %2613 = vmatpush2.msra.mxu0 0.0
    %2614 = vmatprep.subr.mxu0 0.0
    %2615 = vmatpush2.msra.mxu0 0.0
    %2616 = vmatprep.subr.mxu0 0.0
    %2617 = vmatpush2.msra.mxu0 0.0
    %2618 = vmatprep.subr.mxu0 0.0
    %2619 = vmatpush2.msra.mxu0 0.0
    %2620 = vmatprep.subr.mxu0 0.0
    %2621 = vmatpush2.msra.mxu0 0.0
    %2622 = vmatprep.subr.mxu0 0.0
    %2623 = vmatpush2.msra.mxu0 0.0
    %2624 = vmatprep.subr.mxu0 0.0
    %2625 = vmatpush2.msra.mxu0 0.0
    %2626 = vmatprep.subr.mxu0 0.0
    %2627 = vmatpush2.msra.mxu0 0.0
    %2628 = vmatprep.subr.mxu0 0.0
    %2629 = vmatpush2.msra.mxu0 0.0
    %2630 = vmatprep.subr.mxu0 0.0
    %2631 = vmatpush2.msra.mxu0 0.0
    %2632 = vmatprep.subr.mxu0 0.0
    %2633 = vmatpush2.msra.mxu0 0.0
    %2634 = vmatprep.mubr.f32.mxu0 0.0
    %2635 = vmatmul.mubr.f32.gmra.mxu0 %v2562
    %v2636 = vpop.f32.mrf.mxu0
    %v2637 = vadd.f32 0.0, %v2636
    %v2638 = vpop.f32.mrf.mxu0
    %2639 = vmatprep.mubr.f32.mxu0 0.0
    %2640 = vmatmul.mubr.f32.gmra.mxu0 %v2564
    %v2641 = vpop.f32.mrf.mxu0
    %v2642 = vpop.f32.mrf.mxu0
    %2643 = vmatprep.mubr.f32.mxu0 0.0
    %2644 = vmatmul.mubr.f32.gmra.mxu0 %v2566
    %v2645 = vpop.f32.mrf.mxu0
    %v2646 = vpop.f32.mrf.mxu0
    %2647 = vmatprep.mubr.f32.mxu0 0.0
    %2648 = vmatmul.mubr.f32.gmra.mxu0 %v2568
    %v2649 = vpop.f32.mrf.mxu0
    %v2650 = vadd.f32 0.0, %v2649
    %v2651 = vpop.f32.mrf.mxu0
    %2652 = vdwg.mxu0
    %v2653 = vadd.f32 %v2549, %v2637
    %v2654 = vadd.f32 %v2550, %v2650
    %v2655 = vld [vmem:[#allocation6 + $0x2d0] sm:$0xff]
    %v2656 = vld [vmem:[#allocation6 + $0x2d8] sm:$0xff]
    %v2657 = vrot.slane %v2242, 4
    %v2658 = vrot.slane %v2243, 4
    %v2659 = vsel %vm56, %v2657, %v2658
    %v2660 = vrot.slane %v2244, 4
    %v2661 = vsel %vm56, %v2658, %v2660
    %v2662 = vrot.slane %v2245, 4
    %v2663 = vsel %vm56, %v2660, %v2662
    %v2664 = vrot.slane %v2246, 4
    %v2665 = vsel %vm56, %v2662, %v2664
    %v2666 = vsel %vm1094, %v2659, 0
    %v2668 = vsel %vm1094, %v2661, 0
    %v2670 = vsel %vm1094, %v2663, 0
    %v2672 = vsel %vm1094, %v2665, 0
    %2674 = vmatprep.subr.mxu0 0.0
    %2675 = vmatpush1.msra.mxu0 0.0
    %2676 = vmatprep.subr.mxu0 0.0
    %2677 = vmatpush1.msra.mxu0 0.0
    %2678 = vmatprep.subr.mxu0 0.0
    %2679 = vmatpush1.msra.mxu0 0.0
    %2680 = vmatprep.subr.mxu0 0.0
    %2681 = vmatpush1.msra.mxu0 0.0
    %2682 = vmatprep.subr.mxu0 0.0
    %2683 = vmatpush1.msra.mxu0 0.0
    %2684 = vmatprep.subr.mxu0 0.0
    %2685 = vmatpush1.msra.mxu0 0.0
    %2686 = vmatprep.subr.mxu0 0.0
    %2687 = vmatpush1.msra.mxu0 0.0
    %2688 = vmatprep.subr.mxu0 0.0
    %2689 = vmatpush1.msra.mxu0 0.0
    %2690 = vmatprep.subr.mxu0 0.0
    %2691 = vmatpush1.msra.mxu0 0.0
    %2692 = vmatprep.subr.mxu0 0.0
    %2693 = vmatpush1.msra.mxu0 0.0
    %2694 = vmatprep.subr.mxu0 0.0
    %2695 = vmatpush1.msra.mxu0 0.0
    %2696 = vmatprep.subr.mxu0 0.0
    %2697 = vmatpush1.msra.mxu0 0.0
    %2698 = vmatprep.subr.mxu0 0.0
    %2699 = vmatpush1.msra.mxu0 0.0
    %2700 = vmatprep.subr.mxu0 0.0
    %2701 = vmatpush1.msra.mxu0 0.0
    %2702 = vmatprep.subr.mxu0 0.0
    %2703 = vmatpush1.msra.mxu0 %v2656
    %2704 = vmatprep.subr.mxu0 0.0
    %2705 = vmatpush1.msra.mxu0 %v2655
    %2706 = vmatprep.subr.mxu0 0.0
    %2707 = vmatpush2.msra.mxu0 0.0
    %2708 = vmatprep.subr.mxu0 0.0
    %2709 = vmatpush2.msra.mxu0 0.0
    %2710 = vmatprep.subr.mxu0 0.0
    %2711 = vmatpush2.msra.mxu0 0.0
    %2712 = vmatprep.subr.mxu0 0.0
    %2713 = vmatpush2.msra.mxu0 0.0
    %2714 = vmatprep.subr.mxu0 0.0
    %2715 = vmatpush2.msra.mxu0 0.0
    %2716 = vmatprep.subr.mxu0 0.0
    %2717 = vmatpush2.msra.mxu0 0.0
    %2718 = vmatprep.subr.mxu0 0.0
    %2719 = vmatpush2.msra.mxu0 0.0
    %2720 = vmatprep.subr.mxu0 0.0
    %2721 = vmatpush2.msra.mxu0 0.0
    %2722 = vmatprep.subr.mxu0 0.0
    %2723 = vmatpush2.msra.mxu0 0.0
    %2724 = vmatprep.subr.mxu0 0.0
    %2725 = vmatpush2.msra.mxu0 0.0
    %2726 = vmatprep.subr.mxu0 0.0
    %2727 = vmatpush2.msra.mxu0 0.0
    %2728 = vmatprep.subr.mxu0 0.0
    %2729 = vmatpush2.msra.mxu0 0.0
    %2730 = vmatprep.subr.mxu0 0.0
    %2731 = vmatpush2.msra.mxu0 0.0
    %2732 = vmatprep.subr.mxu0 0.0
    %2733 = vmatpush2.msra.mxu0 0.0
    %2734 = vmatprep.subr.mxu0 0.0
    %2735 = vmatpush2.msra.mxu0 0.0
    %2736 = vmatprep.subr.mxu0 0.0
    %2737 = vmatpush2.msra.mxu0 0.0
    %2738 = vmatprep.mubr.f32.mxu0 0.0
    %2739 = vmatmul.mubr.f32.gmra.mxu0 %v2666
    %v2740 = vpop.f32.mrf.mxu0
    %v2741 = vadd.f32 0.0, %v2740
    %v2742 = vpop.f32.mrf.mxu0
    %2743 = vmatprep.mubr.f32.mxu0 0.0
    %2744 = vmatmul.mubr.f32.gmra.mxu0 %v2668
    %v2745 = vpop.f32.mrf.mxu0
    %v2746 = vpop.f32.mrf.mxu0
    %2747 = vmatprep.mubr.f32.mxu0 0.0
    %2748 = vmatmul.mubr.f32.gmra.mxu0 %v2670
    %v2749 = vpop.f32.mrf.mxu0
    %v2750 = vpop.f32.mrf.mxu0
    %2751 = vmatprep.mubr.f32.mxu0 0.0
    %2752 = vmatmul.mubr.f32.gmra.mxu0 %v2672
    %v2753 = vpop.f32.mrf.mxu0
    %v2754 = vadd.f32 0.0, %v2753
    %v2755 = vpop.f32.mrf.mxu0
    %2756 = vdwg.mxu0
    %v2757 = vadd.f32 %v2653, %v2741
    %v2758 = vadd.f32 %v2654, %v2754
    %v2759 = vld [vmem:[#allocation6 + $0x2e0] sm:$0x1]
    %v2760 = vlaneseq
    %v2761 = vshrl.u32 %v2760, 7
    %v2762 = vsub.s32 0, %v2761
    %v2763 = vrot.slane %v2759, %v2762
    %v2764 = vadd.f32 %v2757, %v2763
    %v2765 = vadd.f32 %v2758, %v2763
    %2766 = vst [vmem:[#allocation8] sm:$0xff] %v2764
    %2767 = vst [vmem:[#allocation8 + $0x8] sm:$0xff] %v2765
    // Predicated region
    $region18: #{tpu_custom_call.1} parent=1 // pred_check
      _
    $region19: #{tpu_custom_call.1} parent=1 // pred_check_branch
      %2769 = sbr.rel (0) target = $region21
    $region20: #{tpu_custom_call.1} parent=1 // pred_region
      %s2771 = ssub.s32 256, 256
      %2772 = vsyncadd [#allocation5], %s2771
      %s2773 = sshll.u32 [#allocation8], 4
      %s2774 = int_to_ptr.vmem [resolvable:$true] %s2773
      %2779 = dma.vmem_to_hbm [thread:$0]  %s2774, 256, %s2, [#allocation5], 128, 128, 8
    $region21: #{tpu_custom_call.1} parent=1 // pred_fallthru
      _
    // Predicated region
    $region22: #{tpu_custom_call.1} parent=1 // pred_check
      _
    $region23: #{tpu_custom_call.1} parent=1 // pred_check_branch
      %2781 = sbr.rel (0) target = $region25
    $region24: #{tpu_custom_call.1} parent=1 // pred_region
      %2782 = dma.done [#allocation5], 256
    $region25: #{tpu_custom_call.1} parent=1 // pred_fallthru
      _
    %2783 = vsyncpa [#allocation4], 1
    %2784 = vsyncpa [#allocation7], 1
    %2785 = vsyncpa [#allocation5], 1

</llo_original>
